<compile_context>
chip_gen: v6e
topology: v6e:2x2x1
jax: 0.10.0
libtpu: 0.0.40
codegen_flags: <defaults>
</compile_context>

<pallas_src>
import functools
import math

import jax
import jax.numpy as jnp
from jax import lax
from jax.experimental import pallas as pl
from jax.experimental.pallas import tpu as pltpu


# ----------------------------------------------------------------------------
# Fused Pallas kernel: all LSTM layers + running max over time of last layer.
# ----------------------------------------------------------------------------
def _fused_lstm_kernel(x_ref, wih0_ref, whh_ref, wih_ref, b_ref, hmax_ref,
                       gx_ref, *, num_layers, batch_padded):
    # x_ref   : (T*Bp, D)           time-major flattened input
    # wih0_ref: (D, 4H)             layer-0 input weights (transposed)
    # whh_ref : (L, H, 4H)          recurrent weights (transposed), all layers
    # wih_ref : (max(L-1,1), H, 4H) input weights (transposed) for layers 1..L-1
    # b_ref   : (L, 1, 4H)          bias (b_ih + b_hh) per layer
    # hmax_ref: (Bp, H)             OUT: max over time of last layer's hidden state
    # gx_ref  : (T*Bp, 4H)          VMEM scratch, gate pre-activations (in-place reuse)
    TB = x_ref.shape[0]
    Bp = batch_padded
    T = TB // Bp
    H = whh_ref.shape[1]
    G = whh_ref.shape[2]
    L = num_layers

    # ---- Preamble: layer-0 input projection as ONE large MXU matmul over all
    # T*Bp rows (parallel, off the recurrent serial chain), stored to scratch.
    gx_ref[...] = (jnp.dot(x_ref[...], wih0_ref[...],
                           preferred_element_type=jnp.float32)
                   + b_ref[0])

    # Lane mask selecting the "g" (cell candidate) gate columns -> tanh, all other
    # gate columns -> sigmoid.  Only worth it while the gates share vregs (H<128).
    if H < 128:
        col = lax.broadcasted_iota(jnp.int32, (Bp, G), 1)
        g_mask = (col >= 2 * H) & (col < 3 * H)

    # TODO(synk): sweep unroll per generation ({2,4,8}, full-unroll cutoff).
    unroll = True if T <= 16 else 8

    def run_layer(whh_l, wih_next, b_next_b, is_last):
        h0 = jnp.zeros((Bp, H), jnp.float32)
        c0 = jnp.zeros((Bp, H), jnp.float32)

        def step(t, carry):
            if is_last:
                h, c, hm = carry
            else:
                h, c = carry
            row = pl.multiple_of(t * Bp, 8)
            # Only the recurrent projection sits on the serial chain.
            gates = (gx_ref[pl.ds(row, Bp), :]
                     + jnp.dot(h, whh_l, preferred_element_type=jnp.float32))
            if H < 128:
                # One full-width sigmoid + one full-width tanh + masked select
                # (2 EUP passes instead of 4) while all gates share vregs.
                act = jnp.where(g_mask, jnp.tanh(gates), jax.nn.sigmoid(gates))
                i_g = act[:, 0 * H:1 * H]
                f_g = act[:, 1 * H:2 * H]
                g_g = act[:, 2 * H:3 * H]
                o_g = act[:, 3 * H:4 * H]
            else:
                i_g = jax.nn.sigmoid(gates[:, 0 * H:1 * H])
                f_g = jax.nn.sigmoid(gates[:, 1 * H:2 * H])
                g_g = jnp.tanh(gates[:, 2 * H:3 * H])
                o_g = jax.nn.sigmoid(gates[:, 3 * H:4 * H])
            c_new = f_g * c + i_g * g_g
            h_new = o_g * jnp.tanh(c_new)
            if not is_last:
                # Next layer's input projection: off this layer's critical path,
                # written IN PLACE over the slot just consumed (read-before-write
                # within this step), dense (8k, 4H) sublane/lane tile.
                gx_ref[pl.ds(row, Bp), :] = (
                    jnp.dot(h_new, wih_next, preferred_element_type=jnp.float32)
                    + b_next_b)
                return (h_new, c_new)
            return (h_new, c_new, jnp.maximum(hm, h_new))

        if is_last:
            hm0 = jnp.full((Bp, H), -jnp.inf, jnp.float32)
            _, _, hm = lax.fori_loop(0, T, step, (h0, c0, hm0), unroll=unroll)
            return hm
        lax.fori_loop(0, T, step, (h0, c0), unroll=unroll)
        return None

    hm = None
    for layer in range(L):                           # L is small & static
        whh_l = whh_ref[layer]                       # (H, 4H), loaded once per layer
        if layer == L - 1:
            hm = run_layer(whh_l, None, None, True)
        else:
            wih_next = wih_ref[layer]                # weights of layer `layer+1`
            # Bias broadcast hoisted out of the T-step serial loop.
            b_next_b = jnp.broadcast_to(b_ref[layer + 1], (Bp, G))
            run_layer(whh_l, wih_next, b_next_b, False)

    hmax_ref[...] = hm


# ----------------------------------------------------------------------------
# Wrapper (glue only): reshape/transpose, batch sublane padding, weight prep.
# ----------------------------------------------------------------------------
def _prep_layer(w_ih, w_hh, b_ih, b_hh):
    wih_t = jnp.asarray(w_ih, jnp.float32).T                       # (Din, 4H)
    whh_t = jnp.asarray(w_hh, jnp.float32).T                       # (H,   4H)
    b = (jnp.asarray(b_ih, jnp.float32)
         + jnp.asarray(b_hh, jnp.float32)).reshape(1, -1)          # (1,   4H)
    return wih_t, whh_t, b


def _round_up(v, m):
    return (v + m - 1) // m * m


@functools.partial(jax.jit, static_argnums=(2,))
def text_lstm_forward(data, params, data_size):
    """TextLSTM.forward: view(B, -1, D) -> L-layer LSTM -> max over time."""
    batch = data.shape[0]
    x = data.reshape(batch, -1, data_size).astype(jnp.float32)     # (B, T, D)
    B, T, D = x.shape
    L = len(params)
    H = params[0][1].shape[1]
    G = 4 * H

    # Pad batch to a sublane multiple so every per-step tile is dense (8, 128).
    SUB = 8
    Bp = _round_up(B, SUB)
    x = jnp.pad(x, ((0, Bp - B), (0, 0), (0, 0)))                  # (Bp, T, D)
    x = jnp.transpose(x, (1, 0, 2)).reshape(T * Bp, D)             # time-major, flat

    prepped = [_prep_layer(*p) for p in params]
    wih0_t = prepped[0][0]                                         # (D, 4H)
    whh_all = jnp.stack([p[1] for p in prepped])                   # (L, H, 4H)
    b_all = jnp.stack([p[2] for p in prepped])                     # (L, 1, 4H)
    if L > 1:
        wih_all = jnp.stack([p[0] for p in prepped[1:]])           # (L-1, H, 4H)
    else:
        wih_all = jnp.zeros((1, H, G), jnp.float32)                # unused dummy

    # VMEM footprint (lane/sublane padded) + headroom; advisory cost estimate.
    lane, f32 = 128, 4
    footprint = f32 * (T * Bp * _round_up(D, lane)                 # x
                       + T * Bp * G                                # gx scratch
                       + _round_up(D, SUB) * G                     # wih0
                       + L * _round_up(H, SUB) * G                 # whh
                       + max(L - 1, 1) * _round_up(H, SUB) * G     # wih (layers 1+)
                       + L * SUB * G                               # biases
                       + Bp * _round_up(H, lane))                  # hmax out
    vmem_limit = int(max(2 * footprint, 1 << 20))

    flops = int(2 * T * Bp * D * G                 # layer-0 projection
                + L * T * 2 * Bp * H * G           # recurrent matmuls
                + (L - 1) * T * 2 * Bp * H * G)    # next-layer projections
    transcendentals = int(L * T * Bp * (G + H))
    bytes_accessed = int(f32 * (T * Bp * D + D * G + (2 * L - 1) * H * G
                                + L * G + Bp * H))

    vmem = pl.BlockSpec(memory_space=pltpu.MemorySpace.VMEM)
    hmax = pl.pallas_call(
        functools.partial(_fused_lstm_kernel, num_layers=L, batch_padded=Bp),
        out_shape=jax.ShapeDtypeStruct((Bp, H), jnp.float32),
        in_specs=[vmem, vmem, vmem, vmem, vmem],
        out_specs=vmem,
        scratch_shapes=[
            pltpu.VMEM((T * Bp, G), jnp.float32),   # gate pre-activations (in-place)
        ],
        compiler_params=pltpu.CompilerParams(vmem_limit_bytes=vmem_limit),
        cost_estimate=pl.CostEstimate(flops=flops,
                                      transcendentals=transcendentals,
                                      bytes_accessed=bytes_accessed),
    )(x, wih0_t, whh_all, wih_all, b_all)
    return hmax[:B]                                                # (B, H)


def init_lstm_params(key, data_size, hidden, num_layers):
    """PyTorch-style uniform(-1/sqrt(H), 1/sqrt(H)) init, deterministic."""
    bound = 1.0 / math.sqrt(hidden)
    params = []
    for layer in range(num_layers):
        in_size = data_size if layer == 0 else hidden
        key, k1, k2, k3, k4 = jax.random.split(key, 5)
        w_ih = jax.random.uniform(k1, (4 * hidden, in_size), jnp.float32, -bound, bound)
        w_hh = jax.random.uniform(k2, (4 * hidden, hidden), jnp.float32, -bound, bound)
        b_ih = jax.random.uniform(k3, (4 * hidden,), jnp.float32, -bound, bound)
        b_hh = jax.random.uniform(k4, (4 * hidden,), jnp.float32, -bound, bound)
        params.append((w_ih, w_hh, b_ih, b_hh))
    return params


# ----------------------------------------------------------------------------
# Pure-JAX reference (for correctness check)
# ----------------------------------------------------------------------------
def text_lstm_ref(data, params, data_size):
    batch = data.shape[0]
    x = data.reshape(batch, -1, data_size).astype(jnp.float32)     # (B, T, D)
    T = x.shape[1]
    for (w_ih, w_hh, b_ih, b_hh) in params:
        H = w_hh.shape[1]
        h = jnp.zeros((batch, H), jnp.float32)
        c = jnp.zeros((batch, H), jnp.float32)
        outs = []
        for t in range(T):
            g = x[:, t, :] @ w_ih.T + h @ w_hh.T + b_ih + b_hh
            i_g = jax.nn.sigmoid(g[:, 0 * H:1 * H])
            f_g = jax.nn.sigmoid(g[:, 1 * H:2 * H])
            g_g = jnp.tanh(g[:, 2 * H:3 * H])
            o_g = jax.nn.sigmoid(g[:, 3 * H:4 * H])
            c = f_g * c + i_g * g_g
            h = o_g * jnp.tanh(c)
            outs.append(h)
        x = jnp.stack(outs, axis=1)                                # (B, T, H)
    return jnp.max(x, axis=1)


if __name__ == "__main__":
    # Config (synthetic, deterministic): hidden_size=32, num_layers=2
    BATCH, SEQ, DATA_SIZE, HIDDEN, NUM_LAYERS = 2, 8, 16, 32, 2

    key = jax.random.PRNGKey(0)
    key, kx = jax.random.split(key)
    data = jax.random.normal(kx, (BATCH, SEQ, DATA_SIZE), jnp.float32)
    params = init_lstm_params(key, DATA_SIZE, HIDDEN, NUM_LAYERS)

    y = text_lstm_forward(data, params, DATA_SIZE)
    y = jax.block_until_ready(y)

    y_ref = text_lstm_ref(data, params, DATA_SIZE)
    assert y.shape == (BATCH, HIDDEN)
    assert jnp.allclose(y, y_ref, atol=1e-4, rtol=1e-4), "mismatch vs JAX reference"

    print("KERNEL_OK")
</pallas_src>

<mosaic_0001>
module attributes {stable_mosaic.version = 11 : i64} {
  func.func @_fused_lstm_kernel(%arg0: memref<64x16xf32, #tpu.memory_space<vmem>>, %arg1: memref<16x128xf32, #tpu.memory_space<vmem>>, %arg2: memref<2x32x128xf32, #tpu.memory_space<vmem>>, %arg3: memref<1x32x128xf32, #tpu.memory_space<vmem>>, %arg4: memref<2x1x128xf32, #tpu.memory_space<vmem>>, %arg5: memref<8x32xf32, #tpu.memory_space<vmem>>, %arg6: memref<64x128xf32, #tpu.memory_space<vmem>>) attributes {dimension_semantics = [], scalar_prefetch = 0 : i64, scratch_operands = 1 : i64, tpu.core_type = #tpu.core_type<tc>} {
    %c0 = arith.constant 0 : index
    %c0_0 = arith.constant 0 : index
    %0 = vector.load %arg0[%c0, %c0_0] : memref<64x16xf32, #tpu.memory_space<vmem>>, vector<64x16xf32>
    %c0_1 = arith.constant 0 : index
    %c0_2 = arith.constant 0 : index
    %1 = vector.load %arg1[%c0_1, %c0_2] : memref<16x128xf32, #tpu.memory_space<vmem>>, vector<16x128xf32>
    %cst = arith.constant dense<0.000000e+00> : vector<64x128xf32>
    %2 = tpu.matmul %0, %1, %cst {dimension_numbers = #tpu.dot_dimension_numbers<[1], [0], [0], [1], [0, 0, 1, 1], [], []>} : vector<64x16xf32>, vector<16x128xf32>, vector<64x128xf32> -> vector<64x128xf32>
    %c0_3 = arith.constant 0 : index
    %c0_4 = arith.constant 0 : index
    %c0_5 = arith.constant 0 : index
    %3 = vector.load %arg4[%c0_3, %c0_4, %c0_5] : memref<2x1x128xf32, #tpu.memory_space<vmem>>, vector<1x1x128xf32>
    %4 = vector.shape_cast %3 : vector<1x1x128xf32> to vector<1x128xf32>
    %5 = vector.broadcast %4 : vector<1x128xf32> to vector<64x128xf32>
    %6 = arith.addf %2, %5 : vector<64x128xf32>
    %c0_6 = arith.constant 0 : index
    %c0_7 = arith.constant 0 : index
    %7 = vector.load %arg6[%c0_6, %c0_7] : memref<64x128xf32, #tpu.memory_space<vmem>>, vector<64x128xf32>
    tpu.vector_store %arg6[%c0_6, %c0_7], %6 {strides = array<i32>} : memref<64x128xf32, #tpu.memory_space<vmem>>, vector<64x128xf32>,
    %8 = tpu.iota {dimensions = array<i32: 1>} : vector<8x128xi32>
    %c64_i32 = arith.constant 64 : i32
    %9 = vector.broadcast %c64_i32 : i32 to vector<8x128xi32>
    %10 = arith.cmpi sge, %8, %9 : vector<8x128xi32>
    %c96_i32 = arith.constant 96 : i32
    %11 = vector.broadcast %c96_i32 : i32 to vector<8x128xi32>
    %12 = arith.cmpi slt, %8, %11 : vector<8x128xi32>
    %13 = arith.andi %10, %12 : vector<8x128xi1>
    %c0_8 = arith.constant 0 : index
    %c0_9 = arith.constant 0 : index
    %c0_10 = arith.constant 0 : index
    %14 = vector.load %arg2[%c0_8, %c0_9, %c0_10] : memref<2x32x128xf32, #tpu.memory_space<vmem>>, vector<1x32x128xf32>
    %15 = vector.shape_cast %14 : vector<1x32x128xf32> to vector<32x128xf32>
    %c0_11 = arith.constant 0 : index
    %c0_12 = arith.constant 0 : index
    %c0_13 = arith.constant 0 : index
    %16 = vector.load %arg3[%c0_11, %c0_12, %c0_13] : memref<1x32x128xf32, #tpu.memory_space<vmem>>, vector<1x32x128xf32>
    %17 = vector.shape_cast %16 : vector<1x32x128xf32> to vector<32x128xf32>
    %c1 = arith.constant 1 : index
    %c0_14 = arith.constant 0 : index
    %c0_15 = arith.constant 0 : index
    %18 = vector.load %arg4[%c1, %c0_14, %c0_15] : memref<2x1x128xf32, #tpu.memory_space<vmem>>, vector<1x1x128xf32>
    %19 = vector.shape_cast %18 : vector<1x1x128xf32> to vector<1x128xf32>
    %20 = vector.shape_cast %19 : vector<1x128xf32> to vector<1x128xf32>
    %21 = vector.broadcast %20 : vector<1x128xf32> to vector<8x128xf32>
    %cst_16 = arith.constant 0.000000e+00 : f32
    %22 = vector.broadcast %cst_16 : f32 to vector<8x32xf32>
    %cst_17 = arith.constant 0.000000e+00 : f32
    %23 = vector.broadcast %cst_17 : f32 to vector<8x32xf32>
    %c0_i32 = arith.constant 0 : i32
    %c8_i32 = arith.constant 8 : i32
    %24 = arith.muli %c0_i32, %c8_i32 : i32
    %25 = tpu.assume_multiple %24, 8 : i32
    %26 = arith.index_cast %25 : i32 to index
    %c0_18 = arith.constant 0 : index
    %27 = vector.load %arg6[%26, %c0_18] : memref<64x128xf32, #tpu.memory_space<vmem>>, vector<8x128xf32>
    %cst_19 = arith.constant dense<0.000000e+00> : vector<8x128xf32>
    %28 = tpu.matmul %22, %15, %cst_19 {dimension_numbers = #tpu.dot_dimension_numbers<[1], [0], [0], [1], [0, 0, 1, 1], [], []>} : vector<8x32xf32>, vector<32x128xf32>, vector<8x128xf32> -> vector<8x128xf32>
    %29 = arith.addf %27, %28 : vector<8x128xf32>
    %30 = math.tanh %29 : vector<8x128xf32>
    %31 = arith.negf %29 : vector<8x128xf32>
    %32 = math.exp %31 : vector<8x128xf32>
    %cst_20 = arith.constant 1.000000e+00 : f32
    %33 = vector.broadcast %cst_20 : f32 to vector<8x128xf32>
    %34 = arith.addf %33, %32 : vector<8x128xf32>
    %35 = arith.divf %33, %34 : vector<8x128xf32>
    %36 = arith.select %13, %30, %35 : vector<8x128xi1>, vector<8x128xf32>
    %37 = vector.extract_strided_slice %36 {offsets = [0, 0], sizes = [8, 32], strides = [1, 1]} : vector<8x128xf32> to vector<8x32xf32>
    %38 = vector.extract_strided_slice %36 {offsets = [0, 32], sizes = [8, 32], strides = [1, 1]} : vector<8x128xf32> to vector<8x32xf32>
    %39 = vector.extract_strided_slice %36 {offsets = [0, 64], sizes = [8, 32], strides = [1, 1]} : vector<8x128xf32> to vector<8x32xf32>
    %40 = vector.extract_strided_slice %36 {offsets = [0, 96], sizes = [8, 32], strides = [1, 1]} : vector<8x128xf32> to vector<8x32xf32>
    %41 = arith.mulf %38, %23 : vector<8x32xf32>
    %42 = arith.mulf %37, %39 : vector<8x32xf32>
    %43 = arith.addf %41, %42 : vector<8x32xf32>
    %44 = math.tanh %43 : vector<8x32xf32>
    %45 = arith.mulf %40, %44 : vector<8x32xf32>
    %cst_21 = arith.constant dense<0.000000e+00> : vector<8x128xf32>
    %46 = tpu.matmul %45, %17, %cst_21 {dimension_numbers = #tpu.dot_dimension_numbers<[1], [0], [0], [1], [0, 0, 1, 1], [], []>} : vector<8x32xf32>, vector<32x128xf32>, vector<8x128xf32> -> vector<8x128xf32>
    %47 = arith.addf %46, %21 : vector<8x128xf32>
    %48 = arith.index_cast %25 : i32 to index
    %c0_22 = arith.constant 0 : index
    %49 = vector.load %arg6[%48, %c0_22] : memref<64x128xf32, #tpu.memory_space<vmem>>, vector<8x128xf32>
    tpu.vector_store %arg6[%48, %c0_22], %47 {strides = array<i32>} : memref<64x128xf32, #tpu.memory_space<vmem>>, vector<8x128xf32>,
    %c1_i32 = arith.constant 1 : i32
    %c8_i32_23 = arith.constant 8 : i32
    %50 = arith.muli %c1_i32, %c8_i32_23 : i32
    %51 = tpu.assume_multiple %50, 8 : i32
    %52 = arith.index_cast %51 : i32 to index
    %c0_24 = arith.constant 0 : index
    %53 = vector.load %arg6[%52, %c0_24] : memref<64x128xf32, #tpu.memory_space<vmem>>, vector<8x128xf32>
    %cst_25 = arith.constant dense<0.000000e+00> : vector<8x128xf32>
    %54 = tpu.matmul %45, %15, %cst_25 {dimension_numbers = #tpu.dot_dimension_numbers<[1], [0], [0], [1], [0, 0, 1, 1], [], []>} : vector<8x32xf32>, vector<32x128xf32>, vector<8x128xf32> -> vector<8x128xf32>
    %55 = arith.addf %53, %54 : vector<8x128xf32>
    %56 = math.tanh %55 : vector<8x128xf32>
    %57 = arith.negf %55 : vector<8x128xf32>
    %58 = math.exp %57 : vector<8x128xf32>
    %cst_26 = arith.constant 1.000000e+00 : f32
    %59 = vector.broadcast %cst_26 : f32 to vector<8x128xf32>
    %60 = arith.addf %59, %58 : vector<8x128xf32>
    %61 = arith.divf %59, %60 : vector<8x128xf32>
    %62 = arith.select %13, %56, %61 : vector<8x128xi1>, vector<8x128xf32>
    %63 = vector.extract_strided_slice %62 {offsets = [0, 0], sizes = [8, 32], strides = [1, 1]} : vector<8x128xf32> to vector<8x32xf32>
    %64 = vector.extract_strided_slice %62 {offsets = [0, 32], sizes = [8, 32], strides = [1, 1]} : vector<8x128xf32> to vector<8x32xf32>
    %65 = vector.extract_strided_slice %62 {offsets = [0, 64], sizes = [8, 32], strides = [1, 1]} : vector<8x128xf32> to vector<8x32xf32>
    %66 = vector.extract_strided_slice %62 {offsets = [0, 96], sizes = [8, 32], strides = [1, 1]} : vector<8x128xf32> to vector<8x32xf32>
    %67 = arith.mulf %64, %43 : vector<8x32xf32>
    %68 = arith.mulf %63, %65 : vector<8x32xf32>
    %69 = arith.addf %67, %68 : vector<8x32xf32>
    %70 = math.tanh %69 : vector<8x32xf32>
    %71 = arith.mulf %66, %70 : vector<8x32xf32>
    %cst_27 = arith.constant dense<0.000000e+00> : vector<8x128xf32>
    %72 = tpu.matmul %71, %17, %cst_27 {dimension_numbers = #tpu.dot_dimension_numbers<[1], [0], [0], [1], [0, 0, 1, 1], [], []>} : vector<8x32xf32>, vector<32x128xf32>, vector<8x128xf32> -> vector<8x128xf32>
    %73 = arith.addf %72, %21 : vector<8x128xf32>
    %74 = arith.index_cast %51 : i32 to index
    %c0_28 = arith.constant 0 : index
    %75 = vector.load %arg6[%74, %c0_28] : memref<64x128xf32, #tpu.memory_space<vmem>>, vector<8x128xf32>
    tpu.vector_store %arg6[%74, %c0_28], %73 {strides = array<i32>} : memref<64x128xf32, #tpu.memory_space<vmem>>, vector<8x128xf32>,
    %c2_i32 = arith.constant 2 : i32
    %c8_i32_29 = arith.constant 8 : i32
    %76 = arith.muli %c2_i32, %c8_i32_29 : i32
    %77 = tpu.assume_multiple %76, 8 : i32
    %78 = arith.index_cast %77 : i32 to index
    %c0_30 = arith.constant 0 : index
    %79 = vector.load %arg6[%78, %c0_30] : memref<64x128xf32, #tpu.memory_space<vmem>>, vector<8x128xf32>
    %cst_31 = arith.constant dense<0.000000e+00> : vector<8x128xf32>
    %80 = tpu.matmul %71, %15, %cst_31 {dimension_numbers = #tpu.dot_dimension_numbers<[1], [0], [0], [1], [0, 0, 1, 1], [], []>} : vector<8x32xf32>, vector<32x128xf32>, vector<8x128xf32> -> vector<8x128xf32>
    %81 = arith.addf %79, %80 : vector<8x128xf32>
    %82 = math.tanh %81 : vector<8x128xf32>
    %83 = arith.negf %81 : vector<8x128xf32>
    %84 = math.exp %83 : vector<8x128xf32>
    %cst_32 = arith.constant 1.000000e+00 : f32
    %85 = vector.broadcast %cst_32 : f32 to vector<8x128xf32>
    %86 = arith.addf %85, %84 : vector<8x128xf32>
    %87 = arith.divf %85, %86 : vector<8x128xf32>
    %88 = arith.select %13, %82, %87 : vector<8x128xi1>, vector<8x128xf32>
    %89 = vector.extract_strided_slice %88 {offsets = [0, 0], sizes = [8, 32], strides = [1, 1]} : vector<8x128xf32> to vector<8x32xf32>
    %90 = vector.extract_strided_slice %88 {offsets = [0, 32], sizes = [8, 32], strides = [1, 1]} : vector<8x128xf32> to vector<8x32xf32>
    %91 = vector.extract_strided_slice %88 {offsets = [0, 64], sizes = [8, 32], strides = [1, 1]} : vector<8x128xf32> to vector<8x32xf32>
    %92 = vector.extract_strided_slice %88 {offsets = [0, 96], sizes = [8, 32], strides = [1, 1]} : vector<8x128xf32> to vector<8x32xf32>
    %93 = arith.mulf %90, %69 : vector<8x32xf32>
    %94 = arith.mulf %89, %91 : vector<8x32xf32>
    %95 = arith.addf %93, %94 : vector<8x32xf32>
    %96 = math.tanh %95 : vector<8x32xf32>
    %97 = arith.mulf %92, %96 : vector<8x32xf32>
    %cst_33 = arith.constant dense<0.000000e+00> : vector<8x128xf32>
    %98 = tpu.matmul %97, %17, %cst_33 {dimension_numbers = #tpu.dot_dimension_numbers<[1], [0], [0], [1], [0, 0, 1, 1], [], []>} : vector<8x32xf32>, vector<32x128xf32>, vector<8x128xf32> -> vector<8x128xf32>
    %99 = arith.addf %98, %21 : vector<8x128xf32>
    %100 = arith.index_cast %77 : i32 to index
    %c0_34 = arith.constant 0 : index
    %101 = vector.load %arg6[%100, %c0_34] : memref<64x128xf32, #tpu.memory_space<vmem>>, vector<8x128xf32>
    tpu.vector_store %arg6[%100, %c0_34], %99 {strides = array<i32>} : memref<64x128xf32, #tpu.memory_space<vmem>>, vector<8x128xf32>,
    %c3_i32 = arith.constant 3 : i32
    %c8_i32_35 = arith.constant 8 : i32
    %102 = arith.muli %c3_i32, %c8_i32_35 : i32
    %103 = tpu.assume_multiple %102, 8 : i32
    %104 = arith.index_cast %103 : i32 to index
    %c0_36 = arith.constant 0 : index
    %105 = vector.load %arg6[%104, %c0_36] : memref<64x128xf32, #tpu.memory_space<vmem>>, vector<8x128xf32>
    %cst_37 = arith.constant dense<0.000000e+00> : vector<8x128xf32>
    %106 = tpu.matmul %97, %15, %cst_37 {dimension_numbers = #tpu.dot_dimension_numbers<[1], [0], [0], [1], [0, 0, 1, 1], [], []>} : vector<8x32xf32>, vector<32x128xf32>, vector<8x128xf32> -> vector<8x128xf32>
    %107 = arith.addf %105, %106 : vector<8x128xf32>
    %108 = math.tanh %107 : vector<8x128xf32>
    %109 = arith.negf %107 : vector<8x128xf32>
    %110 = math.exp %109 : vector<8x128xf32>
    %cst_38 = arith.constant 1.000000e+00 : f32
    %111 = vector.broadcast %cst_38 : f32 to vector<8x128xf32>
    %112 = arith.addf %111, %110 : vector<8x128xf32>
    %113 = arith.divf %111, %112 : vector<8x128xf32>
    %114 = arith.select %13, %108, %113 : vector<8x128xi1>, vector<8x128xf32>
    %115 = vector.extract_strided_slice %114 {offsets = [0, 0], sizes = [8, 32], strides = [1, 1]} : vector<8x128xf32> to vector<8x32xf32>
    %116 = vector.extract_strided_slice %114 {offsets = [0, 32], sizes = [8, 32], strides = [1, 1]} : vector<8x128xf32> to vector<8x32xf32>
    %117 = vector.extract_strided_slice %114 {offsets = [0, 64], sizes = [8, 32], strides = [1, 1]} : vector<8x128xf32> to vector<8x32xf32>
    %118 = vector.extract_strided_slice %114 {offsets = [0, 96], sizes = [8, 32], strides = [1, 1]} : vector<8x128xf32> to vector<8x32xf32>
    %119 = arith.mulf %116, %95 : vector<8x32xf32>
    %120 = arith.mulf %115, %117 : vector<8x32xf32>
    %121 = arith.addf %119, %120 : vector<8x32xf32>
    %122 = math.tanh %121 : vector<8x32xf32>
    %123 = arith.mulf %118, %122 : vector<8x32xf32>
    %cst_39 = arith.constant dense<0.000000e+00> : vector<8x128xf32>
    %124 = tpu.matmul %123, %17, %cst_39 {dimension_numbers = #tpu.dot_dimension_numbers<[1], [0], [0], [1], [0, 0, 1, 1], [], []>} : vector<8x32xf32>, vector<32x128xf32>, vector<8x128xf32> -> vector<8x128xf32>
    %125 = arith.addf %124, %21 : vector<8x128xf32>
    %126 = arith.index_cast %103 : i32 to index
    %c0_40 = arith.constant 0 : index
    %127 = vector.load %arg6[%126, %c0_40] : memref<64x128xf32, #tpu.memory_space<vmem>>, vector<8x128xf32>
    tpu.vector_store %arg6[%126, %c0_40], %125 {strides = array<i32>} : memref<64x128xf32, #tpu.memory_space<vmem>>, vector<8x128xf32>,
    %c4_i32 = arith.constant 4 : i32
    %c8_i32_41 = arith.constant 8 : i32
    %128 = arith.muli %c4_i32, %c8_i32_41 : i32
    %129 = tpu.assume_multiple %128, 8 : i32
    %130 = arith.index_cast %129 : i32 to index
    %c0_42 = arith.constant 0 : index
    %131 = vector.load %arg6[%130, %c0_42] : memref<64x128xf32, #tpu.memory_space<vmem>>, vector<8x128xf32>
    %cst_43 = arith.constant dense<0.000000e+00> : vector<8x128xf32>
    %132 = tpu.matmul %123, %15, %cst_43 {dimension_numbers = #tpu.dot_dimension_numbers<[1], [0], [0], [1], [0, 0, 1, 1], [], []>} : vector<8x32xf32>, vector<32x128xf32>, vector<8x128xf32> -> vector<8x128xf32>
    %133 = arith.addf %131, %132 : vector<8x128xf32>
    %134 = math.tanh %133 : vector<8x128xf32>
    %135 = arith.negf %133 : vector<8x128xf32>
    %136 = math.exp %135 : vector<8x128xf32>
    %cst_44 = arith.constant 1.000000e+00 : f32
    %137 = vector.broadcast %cst_44 : f32 to vector<8x128xf32>
    %138 = arith.addf %137, %136 : vector<8x128xf32>
    %139 = arith.divf %137, %138 : vector<8x128xf32>
    %140 = arith.select %13, %134, %139 : vector<8x128xi1>, vector<8x128xf32>
    %141 = vector.extract_strided_slice %140 {offsets = [0, 0], sizes = [8, 32], strides = [1, 1]} : vector<8x128xf32> to vector<8x32xf32>
    %142 = vector.extract_strided_slice %140 {offsets = [0, 32], sizes = [8, 32], strides = [1, 1]} : vector<8x128xf32> to vector<8x32xf32>
    %143 = vector.extract_strided_slice %140 {offsets = [0, 64], sizes = [8, 32], strides = [1, 1]} : vector<8x128xf32> to vector<8x32xf32>
    %144 = vector.extract_strided_slice %140 {offsets = [0, 96], sizes = [8, 32], strides = [1, 1]} : vector<8x128xf32> to vector<8x32xf32>
    %145 = arith.mulf %142, %121 : vector<8x32xf32>
    %146 = arith.mulf %141, %143 : vector<8x32xf32>
    %147 = arith.addf %145, %146 : vector<8x32xf32>
    %148 = math.tanh %147 : vector<8x32xf32>
    %149 = arith.mulf %144, %148 : vector<8x32xf32>
    %cst_45 = arith.constant dense<0.000000e+00> : vector<8x128xf32>
    %150 = tpu.matmul %149, %17, %cst_45 {dimension_numbers = #tpu.dot_dimension_numbers<[1], [0], [0], [1], [0, 0, 1, 1], [], []>} : vector<8x32xf32>, vector<32x128xf32>, vector<8x128xf32> -> vector<8x128xf32>
    %151 = arith.addf %150, %21 : vector<8x128xf32>
    %152 = arith.index_cast %129 : i32 to index
    %c0_46 = arith.constant 0 : index
    %153 = vector.load %arg6[%152, %c0_46] : memref<64x128xf32, #tpu.memory_space<vmem>>, vector<8x128xf32>
    tpu.vector_store %arg6[%152, %c0_46], %151 {strides = array<i32>} : memref<64x128xf32, #tpu.memory_space<vmem>>, vector<8x128xf32>,
    %c5_i32 = arith.constant 5 : i32
    %c8_i32_47 = arith.constant 8 : i32
    %154 = arith.muli %c5_i32, %c8_i32_47 : i32
    %155 = tpu.assume_multiple %154, 8 : i32
    %156 = arith.index_cast %155 : i32 to index
    %c0_48 = arith.constant 0 : index
    %157 = vector.load %arg6[%156, %c0_48] : memref<64x128xf32, #tpu.memory_space<vmem>>, vector<8x128xf32>
    %cst_49 = arith.constant dense<0.000000e+00> : vector<8x128xf32>
    %158 = tpu.matmul %149, %15, %cst_49 {dimension_numbers = #tpu.dot_dimension_numbers<[1], [0], [0], [1], [0, 0, 1, 1], [], []>} : vector<8x32xf32>, vector<32x128xf32>, vector<8x128xf32> -> vector<8x128xf32>
    %159 = arith.addf %157, %158 : vector<8x128xf32>
    %160 = math.tanh %159 : vector<8x128xf32>
    %161 = arith.negf %159 : vector<8x128xf32>
    %162 = math.exp %161 : vector<8x128xf32>
    %cst_50 = arith.constant 1.000000e+00 : f32
    %163 = vector.broadcast %cst_50 : f32 to vector<8x128xf32>
    %164 = arith.addf %163, %162 : vector<8x128xf32>
    %165 = arith.divf %163, %164 : vector<8x128xf32>
    %166 = arith.select %13, %160, %165 : vector<8x128xi1>, vector<8x128xf32>
    %167 = vector.extract_strided_slice %166 {offsets = [0, 0], sizes = [8, 32], strides = [1, 1]} : vector<8x128xf32> to vector<8x32xf32>
    %168 = vector.extract_strided_slice %166 {offsets = [0, 32], sizes = [8, 32], strides = [1, 1]} : vector<8x128xf32> to vector<8x32xf32>
    %169 = vector.extract_strided_slice %166 {offsets = [0, 64], sizes = [8, 32], strides = [1, 1]} : vector<8x128xf32> to vector<8x32xf32>
    %170 = vector.extract_strided_slice %166 {offsets = [0, 96], sizes = [8, 32], strides = [1, 1]} : vector<8x128xf32> to vector<8x32xf32>
    %171 = arith.mulf %168, %147 : vector<8x32xf32>
    %172 = arith.mulf %167, %169 : vector<8x32xf32>
    %173 = arith.addf %171, %172 : vector<8x32xf32>
    %174 = math.tanh %173 : vector<8x32xf32>
    %175 = arith.mulf %170, %174 : vector<8x32xf32>
    %cst_51 = arith.constant dense<0.000000e+00> : vector<8x128xf32>
    %176 = tpu.matmul %175, %17, %cst_51 {dimension_numbers = #tpu.dot_dimension_numbers<[1], [0], [0], [1], [0, 0, 1, 1], [], []>} : vector<8x32xf32>, vector<32x128xf32>, vector<8x128xf32> -> vector<8x128xf32>
    %177 = arith.addf %176, %21 : vector<8x128xf32>
    %178 = arith.index_cast %155 : i32 to index
    %c0_52 = arith.constant 0 : index
    %179 = vector.load %arg6[%178, %c0_52] : memref<64x128xf32, #tpu.memory_space<vmem>>, vector<8x128xf32>
    tpu.vector_store %arg6[%178, %c0_52], %177 {strides = array<i32>} : memref<64x128xf32, #tpu.memory_space<vmem>>, vector<8x128xf32>,
    %c6_i32 = arith.constant 6 : i32
    %c8_i32_53 = arith.constant 8 : i32
    %180 = arith.muli %c6_i32, %c8_i32_53 : i32
    %181 = tpu.assume_multiple %180, 8 : i32
    %182 = arith.index_cast %181 : i32 to index
    %c0_54 = arith.constant 0 : index
    %183 = vector.load %arg6[%182, %c0_54] : memref<64x128xf32, #tpu.memory_space<vmem>>, vector<8x128xf32>
    %cst_55 = arith.constant dense<0.000000e+00> : vector<8x128xf32>
    %184 = tpu.matmul %175, %15, %cst_55 {dimension_numbers = #tpu.dot_dimension_numbers<[1], [0], [0], [1], [0, 0, 1, 1], [], []>} : vector<8x32xf32>, vector<32x128xf32>, vector<8x128xf32> -> vector<8x128xf32>
    %185 = arith.addf %183, %184 : vector<8x128xf32>
    %186 = math.tanh %185 : vector<8x128xf32>
    %187 = arith.negf %185 : vector<8x128xf32>
    %188 = math.exp %187 : vector<8x128xf32>
    %cst_56 = arith.constant 1.000000e+00 : f32
    %189 = vector.broadcast %cst_56 : f32 to vector<8x128xf32>
    %190 = arith.addf %189, %188 : vector<8x128xf32>
    %191 = arith.divf %189, %190 : vector<8x128xf32>
    %192 = arith.select %13, %186, %191 : vector<8x128xi1>, vector<8x128xf32>
    %193 = vector.extract_strided_slice %192 {offsets = [0, 0], sizes = [8, 32], strides = [1, 1]} : vector<8x128xf32> to vector<8x32xf32>
    %194 = vector.extract_strided_slice %192 {offsets = [0, 32], sizes = [8, 32], strides = [1, 1]} : vector<8x128xf32> to vector<8x32xf32>
    %195 = vector.extract_strided_slice %192 {offsets = [0, 64], sizes = [8, 32], strides = [1, 1]} : vector<8x128xf32> to vector<8x32xf32>
    %196 = vector.extract_strided_slice %192 {offsets = [0, 96], sizes = [8, 32], strides = [1, 1]} : vector<8x128xf32> to vector<8x32xf32>
    %197 = arith.mulf %194, %173 : vector<8x32xf32>
    %198 = arith.mulf %193, %195 : vector<8x32xf32>
    %199 = arith.addf %197, %198 : vector<8x32xf32>
    %200 = math.tanh %199 : vector<8x32xf32>
    %201 = arith.mulf %196, %200 : vector<8x32xf32>
    %cst_57 = arith.constant dense<0.000000e+00> : vector<8x128xf32>
    %202 = tpu.matmul %201, %17, %cst_57 {dimension_numbers = #tpu.dot_dimension_numbers<[1], [0], [0], [1], [0, 0, 1, 1], [], []>} : vector<8x32xf32>, vector<32x128xf32>, vector<8x128xf32> -> vector<8x128xf32>
    %203 = arith.addf %202, %21 : vector<8x128xf32>
    %204 = arith.index_cast %181 : i32 to index
    %c0_58 = arith.constant 0 : index
    %205 = vector.load %arg6[%204, %c0_58] : memref<64x128xf32, #tpu.memory_space<vmem>>, vector<8x128xf32>
    tpu.vector_store %arg6[%204, %c0_58], %203 {strides = array<i32>} : memref<64x128xf32, #tpu.memory_space<vmem>>, vector<8x128xf32>,
    %c7_i32 = arith.constant 7 : i32
    %c8_i32_59 = arith.constant 8 : i32
    %206 = arith.muli %c7_i32, %c8_i32_59 : i32
    %207 = tpu.assume_multiple %206, 8 : i32
    %208 = arith.index_cast %207 : i32 to index
    %c0_60 = arith.constant 0 : index
    %209 = vector.load %arg6[%208, %c0_60] : memref<64x128xf32, #tpu.memory_space<vmem>>, vector<8x128xf32>
    %cst_61 = arith.constant dense<0.000000e+00> : vector<8x128xf32>
    %210 = tpu.matmul %201, %15, %cst_61 {dimension_numbers = #tpu.dot_dimension_numbers<[1], [0], [0], [1], [0, 0, 1, 1], [], []>} : vector<8x32xf32>, vector<32x128xf32>, vector<8x128xf32> -> vector<8x128xf32>
    %211 = arith.addf %209, %210 : vector<8x128xf32>
    %212 = math.tanh %211 : vector<8x128xf32>
    %213 = arith.negf %211 : vector<8x128xf32>
    %214 = math.exp %213 : vector<8x128xf32>
    %cst_62 = arith.constant 1.000000e+00 : f32
    %215 = vector.broadcast %cst_62 : f32 to vector<8x128xf32>
    %216 = arith.addf %215, %214 : vector<8x128xf32>
    %217 = arith.divf %215, %216 : vector<8x128xf32>
    %218 = arith.select %13, %212, %217 : vector<8x128xi1>, vector<8x128xf32>
    %219 = vector.extract_strided_slice %218 {offsets = [0, 0], sizes = [8, 32], strides = [1, 1]} : vector<8x128xf32> to vector<8x32xf32>
    %220 = vector.extract_strided_slice %218 {offsets = [0, 32], sizes = [8, 32], strides = [1, 1]} : vector<8x128xf32> to vector<8x32xf32>
    %221 = vector.extract_strided_slice %218 {offsets = [0, 64], sizes = [8, 32], strides = [1, 1]} : vector<8x128xf32> to vector<8x32xf32>
    %222 = vector.extract_strided_slice %218 {offsets = [0, 96], sizes = [8, 32], strides = [1, 1]} : vector<8x128xf32> to vector<8x32xf32>
    %223 = arith.mulf %220, %199 : vector<8x32xf32>
    %224 = arith.mulf %219, %221 : vector<8x32xf32>
    %225 = arith.addf %223, %224 : vector<8x32xf32>
    %226 = math.tanh %225 : vector<8x32xf32>
    %227 = arith.mulf %222, %226 : vector<8x32xf32>
    %cst_63 = arith.constant dense<0.000000e+00> : vector<8x128xf32>
    %228 = tpu.matmul %227, %17, %cst_63 {dimension_numbers = #tpu.dot_dimension_numbers<[1], [0], [0], [1], [0, 0, 1, 1], [], []>} : vector<8x32xf32>, vector<32x128xf32>, vector<8x128xf32> -> vector<8x128xf32>
    %229 = arith.addf %228, %21 : vector<8x128xf32>
    %230 = arith.index_cast %207 : i32 to index
    %c0_64 = arith.constant 0 : index
    %231 = vector.load %arg6[%230, %c0_64] : memref<64x128xf32, #tpu.memory_space<vmem>>, vector<8x128xf32>
    tpu.vector_store %arg6[%230, %c0_64], %229 {strides = array<i32>} : memref<64x128xf32, #tpu.memory_space<vmem>>, vector<8x128xf32>,
    %c8_i32_65 = arith.constant 8 : i32
    %c1_66 = arith.constant 1 : index
    %c0_67 = arith.constant 0 : index
    %c0_68 = arith.constant 0 : index
    %232 = vector.load %arg2[%c1_66, %c0_67, %c0_68] : memref<2x32x128xf32, #tpu.memory_space<vmem>>, vector<1x32x128xf32>
    %233 = vector.shape_cast %232 : vector<1x32x128xf32> to vector<32x128xf32>
    %cst_69 = arith.constant 0.000000e+00 : f32
    %234 = vector.broadcast %cst_69 : f32 to vector<8x32xf32>
    %cst_70 = arith.constant 0.000000e+00 : f32
    %235 = vector.broadcast %cst_70 : f32 to vector<8x32xf32>
    %cst_71 = arith.constant 0xFF800000 : f32
    %236 = vector.broadcast %cst_71 : f32 to vector<8x32xf32>
    %c0_i32_72 = arith.constant 0 : i32
    %c8_i32_73 = arith.constant 8 : i32
    %237 = arith.muli %c0_i32_72, %c8_i32_73 : i32
    %238 = tpu.assume_multiple %237, 8 : i32
    %239 = arith.index_cast %238 : i32 to index
    %c0_74 = arith.constant 0 : index
    %240 = vector.load %arg6[%239, %c0_74] : memref<64x128xf32, #tpu.memory_space<vmem>>, vector<8x128xf32>
    %cst_75 = arith.constant dense<0.000000e+00> : vector<8x128xf32>
    %241 = tpu.matmul %234, %233, %cst_75 {dimension_numbers = #tpu.dot_dimension_numbers<[1], [0], [0], [1], [0, 0, 1, 1], [], []>} : vector<8x32xf32>, vector<32x128xf32>, vector<8x128xf32> -> vector<8x128xf32>
    %242 = arith.addf %240, %241 : vector<8x128xf32>
    %243 = math.tanh %242 : vector<8x128xf32>
    %244 = arith.negf %242 : vector<8x128xf32>
    %245 = math.exp %244 : vector<8x128xf32>
    %cst_76 = arith.constant 1.000000e+00 : f32
    %246 = vector.broadcast %cst_76 : f32 to vector<8x128xf32>
    %247 = arith.addf %246, %245 : vector<8x128xf32>
    %248 = arith.divf %246, %247 : vector<8x128xf32>
    %249 = arith.select %13, %243, %248 : vector<8x128xi1>, vector<8x128xf32>
    %250 = vector.extract_strided_slice %249 {offsets = [0, 0], sizes = [8, 32], strides = [1, 1]} : vector<8x128xf32> to vector<8x32xf32>
    %251 = vector.extract_strided_slice %249 {offsets = [0, 32], sizes = [8, 32], strides = [1, 1]} : vector<8x128xf32> to vector<8x32xf32>
    %252 = vector.extract_strided_slice %249 {offsets = [0, 64], sizes = [8, 32], strides = [1, 1]} : vector<8x128xf32> to vector<8x32xf32>
    %253 = vector.extract_strided_slice %249 {offsets = [0, 96], sizes = [8, 32], strides = [1, 1]} : vector<8x128xf32> to vector<8x32xf32>
    %254 = arith.mulf %251, %235 : vector<8x32xf32>
    %255 = arith.mulf %250, %252 : vector<8x32xf32>
    %256 = arith.addf %254, %255 : vector<8x32xf32>
    %257 = math.tanh %256 : vector<8x32xf32>
    %258 = arith.mulf %253, %257 : vector<8x32xf32>
    %259 = arith.maximumf %236, %258 : vector<8x32xf32>
    %c1_i32_77 = arith.constant 1 : i32
    %c8_i32_78 = arith.constant 8 : i32
    %260 = arith.muli %c1_i32_77, %c8_i32_78 : i32
    %261 = tpu.assume_multiple %260, 8 : i32
    %262 = arith.index_cast %261 : i32 to index
    %c0_79 = arith.constant 0 : index
    %263 = vector.load %arg6[%262, %c0_79] : memref<64x128xf32, #tpu.memory_space<vmem>>, vector<8x128xf32>
    %cst_80 = arith.constant dense<0.000000e+00> : vector<8x128xf32>
    %264 = tpu.matmul %258, %233, %cst_80 {dimension_numbers = #tpu.dot_dimension_numbers<[1], [0], [0], [1], [0, 0, 1, 1], [], []>} : vector<8x32xf32>, vector<32x128xf32>, vector<8x128xf32> -> vector<8x128xf32>
    %265 = arith.addf %263, %264 : vector<8x128xf32>
    %266 = math.tanh %265 : vector<8x128xf32>
    %267 = arith.negf %265 : vector<8x128xf32>
    %268 = math.exp %267 : vector<8x128xf32>
    %cst_81 = arith.constant 1.000000e+00 : f32
    %269 = vector.broadcast %cst_81 : f32 to vector<8x128xf32>
    %270 = arith.addf %269, %268 : vector<8x128xf32>
    %271 = arith.divf %269, %270 : vector<8x128xf32>
    %272 = arith.select %13, %266, %271 : vector<8x128xi1>, vector<8x128xf32>
    %273 = vector.extract_strided_slice %272 {offsets = [0, 0], sizes = [8, 32], strides = [1, 1]} : vector<8x128xf32> to vector<8x32xf32>
    %274 = vector.extract_strided_slice %272 {offsets = [0, 32], sizes = [8, 32], strides = [1, 1]} : vector<8x128xf32> to vector<8x32xf32>
    %275 = vector.extract_strided_slice %272 {offsets = [0, 64], sizes = [8, 32], strides = [1, 1]} : vector<8x128xf32> to vector<8x32xf32>
    %276 = vector.extract_strided_slice %272 {offsets = [0, 96], sizes = [8, 32], strides = [1, 1]} : vector<8x128xf32> to vector<8x32xf32>
    %277 = arith.mulf %274, %256 : vector<8x32xf32>
    %278 = arith.mulf %273, %275 : vector<8x32xf32>
    %279 = arith.addf %277, %278 : vector<8x32xf32>
    %280 = math.tanh %279 : vector<8x32xf32>
    %281 = arith.mulf %276, %280 : vector<8x32xf32>
    %282 = arith.maximumf %259, %281 : vector<8x32xf32>
    %c2_i32_82 = arith.constant 2 : i32
    %c8_i32_83 = arith.constant 8 : i32
    %283 = arith.muli %c2_i32_82, %c8_i32_83 : i32
    %284 = tpu.assume_multiple %283, 8 : i32
    %285 = arith.index_cast %284 : i32 to index
    %c0_84 = arith.constant 0 : index
    %286 = vector.load %arg6[%285, %c0_84] : memref<64x128xf32, #tpu.memory_space<vmem>>, vector<8x128xf32>
    %cst_85 = arith.constant dense<0.000000e+00> : vector<8x128xf32>
    %287 = tpu.matmul %281, %233, %cst_85 {dimension_numbers = #tpu.dot_dimension_numbers<[1], [0], [0], [1], [0, 0, 1, 1], [], []>} : vector<8x32xf32>, vector<32x128xf32>, vector<8x128xf32> -> vector<8x128xf32>
    %288 = arith.addf %286, %287 : vector<8x128xf32>
    %289 = math.tanh %288 : vector<8x128xf32>
    %290 = arith.negf %288 : vector<8x128xf32>
    %291 = math.exp %290 : vector<8x128xf32>
    %cst_86 = arith.constant 1.000000e+00 : f32
    %292 = vector.broadcast %cst_86 : f32 to vector<8x128xf32>
    %293 = arith.addf %292, %291 : vector<8x128xf32>
    %294 = arith.divf %292, %293 : vector<8x128xf32>
    %295 = arith.select %13, %289, %294 : vector<8x128xi1>, vector<8x128xf32>
    %296 = vector.extract_strided_slice %295 {offsets = [0, 0], sizes = [8, 32], strides = [1, 1]} : vector<8x128xf32> to vector<8x32xf32>
    %297 = vector.extract_strided_slice %295 {offsets = [0, 32], sizes = [8, 32], strides = [1, 1]} : vector<8x128xf32> to vector<8x32xf32>
    %298 = vector.extract_strided_slice %295 {offsets = [0, 64], sizes = [8, 32], strides = [1, 1]} : vector<8x128xf32> to vector<8x32xf32>
    %299 = vector.extract_strided_slice %295 {offsets = [0, 96], sizes = [8, 32], strides = [1, 1]} : vector<8x128xf32> to vector<8x32xf32>
    %300 = arith.mulf %297, %279 : vector<8x32xf32>
    %301 = arith.mulf %296, %298 : vector<8x32xf32>
    %302 = arith.addf %300, %301 : vector<8x32xf32>
    %303 = math.tanh %302 : vector<8x32xf32>
    %304 = arith.mulf %299, %303 : vector<8x32xf32>
    %305 = arith.maximumf %282, %304 : vector<8x32xf32>
    %c3_i32_87 = arith.constant 3 : i32
    %c8_i32_88 = arith.constant 8 : i32
    %306 = arith.muli %c3_i32_87, %c8_i32_88 : i32
    %307 = tpu.assume_multiple %306, 8 : i32
    %308 = arith.index_cast %307 : i32 to index
    %c0_89 = arith.constant 0 : index
    %309 = vector.load %arg6[%308, %c0_89] : memref<64x128xf32, #tpu.memory_space<vmem>>, vector<8x128xf32>
    %cst_90 = arith.constant dense<0.000000e+00> : vector<8x128xf32>
    %310 = tpu.matmul %304, %233, %cst_90 {dimension_numbers = #tpu.dot_dimension_numbers<[1], [0], [0], [1], [0, 0, 1, 1], [], []>} : vector<8x32xf32>, vector<32x128xf32>, vector<8x128xf32> -> vector<8x128xf32>
    %311 = arith.addf %309, %310 : vector<8x128xf32>
    %312 = math.tanh %311 : vector<8x128xf32>
    %313 = arith.negf %311 : vector<8x128xf32>
    %314 = math.exp %313 : vector<8x128xf32>
    %cst_91 = arith.constant 1.000000e+00 : f32
    %315 = vector.broadcast %cst_91 : f32 to vector<8x128xf32>
    %316 = arith.addf %315, %314 : vector<8x128xf32>
    %317 = arith.divf %315, %316 : vector<8x128xf32>
    %318 = arith.select %13, %312, %317 : vector<8x128xi1>, vector<8x128xf32>
    %319 = vector.extract_strided_slice %318 {offsets = [0, 0], sizes = [8, 32], strides = [1, 1]} : vector<8x128xf32> to vector<8x32xf32>
    %320 = vector.extract_strided_slice %318 {offsets = [0, 32], sizes = [8, 32], strides = [1, 1]} : vector<8x128xf32> to vector<8x32xf32>
    %321 = vector.extract_strided_slice %318 {offsets = [0, 64], sizes = [8, 32], strides = [1, 1]} : vector<8x128xf32> to vector<8x32xf32>
    %322 = vector.extract_strided_slice %318 {offsets = [0, 96], sizes = [8, 32], strides = [1, 1]} : vector<8x128xf32> to vector<8x32xf32>
    %323 = arith.mulf %320, %302 : vector<8x32xf32>
    %324 = arith.mulf %319, %321 : vector<8x32xf32>
    %325 = arith.addf %323, %324 : vector<8x32xf32>
    %326 = math.tanh %325 : vector<8x32xf32>
    %327 = arith.mulf %322, %326 : vector<8x32xf32>
    %328 = arith.maximumf %305, %327 : vector<8x32xf32>
    %c4_i32_92 = arith.constant 4 : i32
    %c8_i32_93 = arith.constant 8 : i32
    %329 = arith.muli %c4_i32_92, %c8_i32_93 : i32
    %330 = tpu.assume_multiple %329, 8 : i32
    %331 = arith.index_cast %330 : i32 to index
    %c0_94 = arith.constant 0 : index
    %332 = vector.load %arg6[%331, %c0_94] : memref<64x128xf32, #tpu.memory_space<vmem>>, vector<8x128xf32>
    %cst_95 = arith.constant dense<0.000000e+00> : vector<8x128xf32>
    %333 = tpu.matmul %327, %233, %cst_95 {dimension_numbers = #tpu.dot_dimension_numbers<[1], [0], [0], [1], [0, 0, 1, 1], [], []>} : vector<8x32xf32>, vector<32x128xf32>, vector<8x128xf32> -> vector<8x128xf32>
    %334 = arith.addf %332, %333 : vector<8x128xf32>
    %335 = math.tanh %334 : vector<8x128xf32>
    %336 = arith.negf %334 : vector<8x128xf32>
    %337 = math.exp %336 : vector<8x128xf32>
    %cst_96 = arith.constant 1.000000e+00 : f32
    %338 = vector.broadcast %cst_96 : f32 to vector<8x128xf32>
    %339 = arith.addf %338, %337 : vector<8x128xf32>
    %340 = arith.divf %338, %339 : vector<8x128xf32>
    %341 = arith.select %13, %335, %340 : vector<8x128xi1>, vector<8x128xf32>
    %342 = vector.extract_strided_slice %341 {offsets = [0, 0], sizes = [8, 32], strides = [1, 1]} : vector<8x128xf32> to vector<8x32xf32>
    %343 = vector.extract_strided_slice %341 {offsets = [0, 32], sizes = [8, 32], strides = [1, 1]} : vector<8x128xf32> to vector<8x32xf32>
    %344 = vector.extract_strided_slice %341 {offsets = [0, 64], sizes = [8, 32], strides = [1, 1]} : vector<8x128xf32> to vector<8x32xf32>
    %345 = vector.extract_strided_slice %341 {offsets = [0, 96], sizes = [8, 32], strides = [1, 1]} : vector<8x128xf32> to vector<8x32xf32>
    %346 = arith.mulf %343, %325 : vector<8x32xf32>
    %347 = arith.mulf %342, %344 : vector<8x32xf32>
    %348 = arith.addf %346, %347 : vector<8x32xf32>
    %349 = math.tanh %348 : vector<8x32xf32>
    %350 = arith.mulf %345, %349 : vector<8x32xf32>
    %351 = arith.maximumf %328, %350 : vector<8x32xf32>
    %c5_i32_97 = arith.constant 5 : i32
    %c8_i32_98 = arith.constant 8 : i32
    %352 = arith.muli %c5_i32_97, %c8_i32_98 : i32
    %353 = tpu.assume_multiple %352, 8 : i32
    %354 = arith.index_cast %353 : i32 to index
    %c0_99 = arith.constant 0 : index
    %355 = vector.load %arg6[%354, %c0_99] : memref<64x128xf32, #tpu.memory_space<vmem>>, vector<8x128xf32>
    %cst_100 = arith.constant dense<0.000000e+00> : vector<8x128xf32>
    %356 = tpu.matmul %350, %233, %cst_100 {dimension_numbers = #tpu.dot_dimension_numbers<[1], [0], [0], [1], [0, 0, 1, 1], [], []>} : vector<8x32xf32>, vector<32x128xf32>, vector<8x128xf32> -> vector<8x128xf32>
    %357 = arith.addf %355, %356 : vector<8x128xf32>
    %358 = math.tanh %357 : vector<8x128xf32>
    %359 = arith.negf %357 : vector<8x128xf32>
    %360 = math.exp %359 : vector<8x128xf32>
    %cst_101 = arith.constant 1.000000e+00 : f32
    %361 = vector.broadcast %cst_101 : f32 to vector<8x128xf32>
    %362 = arith.addf %361, %360 : vector<8x128xf32>
    %363 = arith.divf %361, %362 : vector<8x128xf32>
    %364 = arith.select %13, %358, %363 : vector<8x128xi1>, vector<8x128xf32>
    %365 = vector.extract_strided_slice %364 {offsets = [0, 0], sizes = [8, 32], strides = [1, 1]} : vector<8x128xf32> to vector<8x32xf32>
    %366 = vector.extract_strided_slice %364 {offsets = [0, 32], sizes = [8, 32], strides = [1, 1]} : vector<8x128xf32> to vector<8x32xf32>
    %367 = vector.extract_strided_slice %364 {offsets = [0, 64], sizes = [8, 32], strides = [1, 1]} : vector<8x128xf32> to vector<8x32xf32>
    %368 = vector.extract_strided_slice %364 {offsets = [0, 96], sizes = [8, 32], strides = [1, 1]} : vector<8x128xf32> to vector<8x32xf32>
    %369 = arith.mulf %366, %348 : vector<8x32xf32>
    %370 = arith.mulf %365, %367 : vector<8x32xf32>
    %371 = arith.addf %369, %370 : vector<8x32xf32>
    %372 = math.tanh %371 : vector<8x32xf32>
    %373 = arith.mulf %368, %372 : vector<8x32xf32>
    %374 = arith.maximumf %351, %373 : vector<8x32xf32>
    %c6_i32_102 = arith.constant 6 : i32
    %c8_i32_103 = arith.constant 8 : i32
    %375 = arith.muli %c6_i32_102, %c8_i32_103 : i32
    %376 = tpu.assume_multiple %375, 8 : i32
    %377 = arith.index_cast %376 : i32 to index
    %c0_104 = arith.constant 0 : index
    %378 = vector.load %arg6[%377, %c0_104] : memref<64x128xf32, #tpu.memory_space<vmem>>, vector<8x128xf32>
    %cst_105 = arith.constant dense<0.000000e+00> : vector<8x128xf32>
    %379 = tpu.matmul %373, %233, %cst_105 {dimension_numbers = #tpu.dot_dimension_numbers<[1], [0], [0], [1], [0, 0, 1, 1], [], []>} : vector<8x32xf32>, vector<32x128xf32>, vector<8x128xf32> -> vector<8x128xf32>
    %380 = arith.addf %378, %379 : vector<8x128xf32>
    %381 = math.tanh %380 : vector<8x128xf32>
    %382 = arith.negf %380 : vector<8x128xf32>
    %383 = math.exp %382 : vector<8x128xf32>
    %cst_106 = arith.constant 1.000000e+00 : f32
    %384 = vector.broadcast %cst_106 : f32 to vector<8x128xf32>
    %385 = arith.addf %384, %383 : vector<8x128xf32>
    %386 = arith.divf %384, %385 : vector<8x128xf32>
    %387 = arith.select %13, %381, %386 : vector<8x128xi1>, vector<8x128xf32>
    %388 = vector.extract_strided_slice %387 {offsets = [0, 0], sizes = [8, 32], strides = [1, 1]} : vector<8x128xf32> to vector<8x32xf32>
    %389 = vector.extract_strided_slice %387 {offsets = [0, 32], sizes = [8, 32], strides = [1, 1]} : vector<8x128xf32> to vector<8x32xf32>
    %390 = vector.extract_strided_slice %387 {offsets = [0, 64], sizes = [8, 32], strides = [1, 1]} : vector<8x128xf32> to vector<8x32xf32>
    %391 = vector.extract_strided_slice %387 {offsets = [0, 96], sizes = [8, 32], strides = [1, 1]} : vector<8x128xf32> to vector<8x32xf32>
    %392 = arith.mulf %389, %371 : vector<8x32xf32>
    %393 = arith.mulf %388, %390 : vector<8x32xf32>
    %394 = arith.addf %392, %393 : vector<8x32xf32>
    %395 = math.tanh %394 : vector<8x32xf32>
    %396 = arith.mulf %391, %395 : vector<8x32xf32>
    %397 = arith.maximumf %374, %396 : vector<8x32xf32>
    %c7_i32_107 = arith.constant 7 : i32
    %c8_i32_108 = arith.constant 8 : i32
    %398 = arith.muli %c7_i32_107, %c8_i32_108 : i32
    %399 = tpu.assume_multiple %398, 8 : i32
    %400 = arith.index_cast %399 : i32 to index
    %c0_109 = arith.constant 0 : index
    %401 = vector.load %arg6[%400, %c0_109] : memref<64x128xf32, #tpu.memory_space<vmem>>, vector<8x128xf32>
    %cst_110 = arith.constant dense<0.000000e+00> : vector<8x128xf32>
    %402 = tpu.matmul %396, %233, %cst_110 {dimension_numbers = #tpu.dot_dimension_numbers<[1], [0], [0], [1], [0, 0, 1, 1], [], []>} : vector<8x32xf32>, vector<32x128xf32>, vector<8x128xf32> -> vector<8x128xf32>
    %403 = arith.addf %401, %402 : vector<8x128xf32>
    %404 = math.tanh %403 : vector<8x128xf32>
    %405 = arith.negf %403 : vector<8x128xf32>
    %406 = math.exp %405 : vector<8x128xf32>
    %cst_111 = arith.constant 1.000000e+00 : f32
    %407 = vector.broadcast %cst_111 : f32 to vector<8x128xf32>
    %408 = arith.addf %407, %406 : vector<8x128xf32>
    %409 = arith.divf %407, %408 : vector<8x128xf32>
    %410 = arith.select %13, %404, %409 : vector<8x128xi1>, vector<8x128xf32>
    %411 = vector.extract_strided_slice %410 {offsets = [0, 0], sizes = [8, 32], strides = [1, 1]} : vector<8x128xf32> to vector<8x32xf32>
    %412 = vector.extract_strided_slice %410 {offsets = [0, 32], sizes = [8, 32], strides = [1, 1]} : vector<8x128xf32> to vector<8x32xf32>
    %413 = vector.extract_strided_slice %410 {offsets = [0, 64], sizes = [8, 32], strides = [1, 1]} : vector<8x128xf32> to vector<8x32xf32>
    %414 = vector.extract_strided_slice %410 {offsets = [0, 96], sizes = [8, 32], strides = [1, 1]} : vector<8x128xf32> to vector<8x32xf32>
    %415 = arith.mulf %412, %394 : vector<8x32xf32>
    %416 = arith.mulf %411, %413 : vector<8x32xf32>
    %417 = arith.addf %415, %416 : vector<8x32xf32>
    %418 = math.tanh %417 : vector<8x32xf32>
    %419 = arith.mulf %414, %418 : vector<8x32xf32>
    %420 = arith.maximumf %397, %419 : vector<8x32xf32>
    %c8_i32_112 = arith.constant 8 : i32
    %c0_113 = arith.constant 0 : index
    %c0_114 = arith.constant 0 : index
    %421 = vector.load %arg5[%c0_113, %c0_114] : memref<8x32xf32, #tpu.memory_space<vmem>>, vector<8x32xf32>
    tpu.vector_store %arg5[%c0_113, %c0_114], %420 {strides = array<i32>} : memref<8x32xf32, #tpu.memory_space<vmem>>, vector<8x32xf32>,
    return
  }
}

</mosaic_0001>

<llo_original>
// kernel: text_lstm_forward.1
$region0: #{text_lstm_forward.1}
  #allocation0 [shape = 'u32[]', space=smem, size = 0x4, offset = 0x4, fixed_abs, tag = 'smem constant byte address 0x4 - core index']
  #allocation1 [shape = 'u32[144,128]{1,0:T(1,128)}', space=vmem, size = 0x12000, scoped, tag = 'internal scratch']
  #allocation2 [shape = 'f32[64,128]{1,0:T(8,128)}', space=vmem, size = 0x8000, scoped, tag = 'scratch operand']
  %s0 = inlined_call_operand.vmem [shape: f32[64,16], index: 0, kind: input, shape index: {}]
  %s1 = inlined_call_operand.vmem [shape: f32[16,128], index: 1, kind: input, shape index: {}]
  %s2 = inlined_call_operand.vmem [shape: f32[2,32,128], index: 2, kind: input, shape index: {}]
  %s3 = inlined_call_operand.vmem [shape: f32[1,32,128], index: 3, kind: input, shape index: {}]
  %s4 = inlined_call_operand.vmem [shape: f32[2,1,128], index: 4, kind: input, shape index: {}]
  %s5 = inlined_call_operand.vmem [shape: f32[8,32], index: 5, kind: output, shape index: {}]
  %s6 = sld [smem:[#allocation0]]
  $region30: #{text_lstm_forward.1} parent=0
    _
  %s8 = ssub.s32 1, %s6
  %s9 = scalar_select 0, %s8, %s6
  // Predicated region
  $region2: #{text_lstm_forward.1} parent=0 // pred_check
    _
  $region3: #{text_lstm_forward.1} parent=0 // pred_check_branch
    %11 = sbr.rel (0) target = $region5
  $region4: #{text_lstm_forward.1} parent=0 // pred_region
    _
  $region5: #{text_lstm_forward.1} parent=0 // pred_fallthru
    _
  // Predicated region
  $region6: #{text_lstm_forward.1} parent=0 // pred_check
    _
  $region7: #{text_lstm_forward.1} parent=0 // pred_check_branch
    %13 = sbr.rel (0) target = $region9
  $region8: #{text_lstm_forward.1} parent=0 // pred_region
    _
  $region9: #{text_lstm_forward.1} parent=0 // pred_fallthru
    _
  // Predicated region
  $region10: #{text_lstm_forward.1} parent=0 // pred_check
    _
  $region11: #{text_lstm_forward.1} parent=0 // pred_check_branch
    %15 = sbr.rel (0) target = $region13
  $region12: #{text_lstm_forward.1} parent=0 // pred_region
    _
  $region13: #{text_lstm_forward.1} parent=0 // pred_fallthru
    _
  // Predicated region
  $region14: #{text_lstm_forward.1} parent=0 // pred_check
    _
  $region15: #{text_lstm_forward.1} parent=0 // pred_check_branch
    %17 = sbr.rel (0) target = $region17
  $region16: #{text_lstm_forward.1} parent=0 // pred_region
    _
  $region17: #{text_lstm_forward.1} parent=0 // pred_fallthru
    _
  // Predicated region
  $region18: #{text_lstm_forward.1} parent=0 // pred_check
    _
  $region19: #{text_lstm_forward.1} parent=0 // pred_check_branch
    %19 = sbr.rel (0) target = $region21
  $region20: #{text_lstm_forward.1} parent=0 // pred_region
    _
  $region21: #{text_lstm_forward.1} parent=0 // pred_fallthru
    _
  %v20 = vld [vmem:[%s0] sm:$0xff]
  %v21 = vld [vmem:[%s0 + $0x8] sm:$0xff]
  %v22 = vld [vmem:[%s0 + $0x10] sm:$0xff]
  %v23 = vld [vmem:[%s0 + $0x18] sm:$0xff]
  %v24 = vld [vmem:[%s0 + $0x20] sm:$0xff]
  %v25 = vld [vmem:[%s0 + $0x28] sm:$0xff]
  %v26 = vld [vmem:[%s0 + $0x30] sm:$0xff]
  %v27 = vld [vmem:[%s0 + $0x38] sm:$0xff]
  %v28 = vld [vmem:[%s1] sm:$0xff]
  %v29 = vld [vmem:[%s1 + $0x8] sm:$0xff]
  %v30 = vld [vmem:[%s4] sm:$0x1]
  %v32 = vlaneseq
  %v33 = vshrl.u32 %v32, 7
  %v34 = vsub.s32 0, %v33
  %v35 = vrot.slane %v30, %v34
  %vm37 = vcmask 130048
  %v39 = vsel %vm37, %v20, 0
  %v42 = vsel %vm37, %v21, 0
  %v45 = vsel %vm37, %v22, 0
  %v48 = vsel %vm37, %v23, 0
  %v51 = vsel %vm37, %v24, 0
  %v54 = vsel %vm37, %v25, 0
  %v57 = vsel %vm37, %v26, 0
  %v60 = vsel %vm37, %v27, 0
  %62 = vmatprep.subr.mxu0 0.0
  %63 = vmatpush1.msra.mxu0 0.0
  %64 = vmatprep.subr.mxu0 0.0
  %65 = vmatpush1.msra.mxu0 0.0
  %66 = vmatprep.subr.mxu0 0.0
  %67 = vmatpush1.msra.mxu0 0.0
  %68 = vmatprep.subr.mxu0 0.0
  %69 = vmatpush1.msra.mxu0 0.0
  %70 = vmatprep.subr.mxu0 0.0
  %71 = vmatpush1.msra.mxu0 0.0
  %72 = vmatprep.subr.mxu0 0.0
  %73 = vmatpush1.msra.mxu0 0.0
  %74 = vmatprep.subr.mxu0 0.0
  %75 = vmatpush1.msra.mxu0 0.0
  %76 = vmatprep.subr.mxu0 0.0
  %77 = vmatpush1.msra.mxu0 0.0
  %78 = vmatprep.subr.mxu0 0.0
  %79 = vmatpush1.msra.mxu0 0.0
  %80 = vmatprep.subr.mxu0 0.0
  %81 = vmatpush1.msra.mxu0 0.0
  %82 = vmatprep.subr.mxu0 0.0
  %83 = vmatpush1.msra.mxu0 0.0
  %84 = vmatprep.subr.mxu0 0.0
  %85 = vmatpush1.msra.mxu0 0.0
  %86 = vmatprep.subr.mxu0 0.0
  %87 = vmatpush1.msra.mxu0 0.0
  %88 = vmatprep.subr.mxu0 0.0
  %89 = vmatpush1.msra.mxu0 0.0
  %90 = vmatprep.subr.mxu0 0.0
  %91 = vmatpush1.msra.mxu0 %v29
  %92 = vmatprep.subr.mxu0 0.0
  %93 = vmatpush1.msra.mxu0 %v28
  %94 = vmatprep.subr.mxu0 0.0
  %95 = vmatpush2.msra.mxu0 0.0
  %96 = vmatprep.subr.mxu0 0.0
  %97 = vmatpush2.msra.mxu0 0.0
  %98 = vmatprep.subr.mxu0 0.0
  %99 = vmatpush2.msra.mxu0 0.0
  %100 = vmatprep.subr.mxu0 0.0
  %101 = vmatpush2.msra.mxu0 0.0
  %102 = vmatprep.subr.mxu0 0.0
  %103 = vmatpush2.msra.mxu0 0.0
  %104 = vmatprep.subr.mxu0 0.0
  %105 = vmatpush2.msra.mxu0 0.0
  %106 = vmatprep.subr.mxu0 0.0
  %107 = vmatpush2.msra.mxu0 0.0
  %108 = vmatprep.subr.mxu0 0.0
  %109 = vmatpush2.msra.mxu0 0.0
  %110 = vmatprep.subr.mxu0 0.0
  %111 = vmatpush2.msra.mxu0 0.0
  %112 = vmatprep.subr.mxu0 0.0
  %113 = vmatpush2.msra.mxu0 0.0
  %114 = vmatprep.subr.mxu0 0.0
  %115 = vmatpush2.msra.mxu0 0.0
  %116 = vmatprep.subr.mxu0 0.0
  %117 = vmatpush2.msra.mxu0 0.0
  %118 = vmatprep.subr.mxu0 0.0
  %119 = vmatpush2.msra.mxu0 0.0
  %120 = vmatprep.subr.mxu0 0.0
  %121 = vmatpush2.msra.mxu0 0.0
  %122 = vmatprep.subr.mxu0 0.0
  %123 = vmatpush2.msra.mxu0 0.0
  %124 = vmatprep.subr.mxu0 0.0
  %125 = vmatpush2.msra.mxu0 0.0
  %126 = vmatprep.mubr.f32.mxu0 0.0
  %127 = vmatmul.mubr.f32.gmra.mxu0 %v39
  %v128 = vpop.f32.mrf.mxu0
  %v129 = vadd.f32 %v35, %v128
  %v130 = vpop.f32.mrf.mxu0
  %131 = vmatprep.mubr.f32.mxu0 0.0
  %132 = vmatmul.mubr.f32.gmra.mxu0 %v42
  %v133 = vpop.f32.mrf.mxu0
  %v134 = vadd.f32 %v35, %v133
  %v135 = vpop.f32.mrf.mxu0
  %136 = vmatprep.mubr.f32.mxu0 0.0
  %137 = vmatmul.mubr.f32.gmra.mxu0 %v45
  %v138 = vpop.f32.mrf.mxu0
  %v139 = vadd.f32 %v35, %v138
  %v140 = vpop.f32.mrf.mxu0
  %141 = vmatprep.mubr.f32.mxu0 0.0
  %142 = vmatmul.mubr.f32.gmra.mxu0 %v48
  %v143 = vpop.f32.mrf.mxu0
  %v144 = vadd.f32 %v35, %v143
  %v145 = vpop.f32.mrf.mxu0
  %146 = vmatprep.mubr.f32.mxu0 0.0
  %147 = vmatmul.mubr.f32.gmra.mxu0 %v51
  %v148 = vpop.f32.mrf.mxu0
  %v149 = vadd.f32 %v35, %v148
  %v150 = vpop.f32.mrf.mxu0
  %151 = vmatprep.mubr.f32.mxu0 0.0
  %152 = vmatmul.mubr.f32.gmra.mxu0 %v54
  %v153 = vpop.f32.mrf.mxu0
  %v154 = vadd.f32 %v35, %v153
  %v155 = vpop.f32.mrf.mxu0
  %156 = vmatprep.mubr.f32.mxu0 0.0
  %157 = vmatmul.mubr.f32.gmra.mxu0 %v57
  %v158 = vpop.f32.mrf.mxu0
  %v159 = vadd.f32 %v35, %v158
  %v160 = vpop.f32.mrf.mxu0
  %161 = vmatprep.mubr.f32.mxu0 0.0
  %162 = vmatmul.mubr.f32.gmra.mxu0 %v60
  %v163 = vpop.f32.mrf.mxu0
  %v164 = vadd.f32 %v35, %v163
  %v165 = vpop.f32.mrf.mxu0
  %166 = vdwg.mxu0
  %167 = vst [vmem:[#allocation2] sm:$0xff] %v129
  %168 = vst [vmem:[#allocation2 + $0x8] sm:$0xff] %v134
  %169 = vst [vmem:[#allocation2 + $0x10] sm:$0xff] %v139
  %170 = vst [vmem:[#allocation2 + $0x18] sm:$0xff] %v144
  %171 = vst [vmem:[#allocation2 + $0x20] sm:$0xff] %v149
  %172 = vst [vmem:[#allocation2 + $0x28] sm:$0xff] %v154
  %173 = vst [vmem:[#allocation2 + $0x30] sm:$0xff] %v159
  %174 = vst [vmem:[#allocation2 + $0x38] sm:$0xff] %v164
  %v175 = vlaneseq
  %v176 = vand.u32 %v175, 127
  %vm177 = vcmp.ge.s32.totalorder %v176, 64
  %vm178 = vcmp.lt.s32.totalorder %v176, 96
  %vm179 = vmand %vm177, %vm178
  %v180 = vld [vmem:[%s2] sm:$0xff]
  %v181 = vld [vmem:[%s2 + $0x8] sm:$0xff]
  %v182 = vld [vmem:[%s2 + $0x10] sm:$0xff]
  %v183 = vld [vmem:[%s2 + $0x18] sm:$0xff]
  %v184 = vld [vmem:[%s3] sm:$0xff]
  %v185 = vld [vmem:[%s3 + $0x8] sm:$0xff]
  %v186 = vld [vmem:[%s3 + $0x10] sm:$0xff]
  %v187 = vld [vmem:[%s3 + $0x18] sm:$0xff]
  %s188 = scalar_lea.vmem %s4, 1
  %v189 = vld [vmem:[%s188] sm:$0x1]
  %v191 = vlaneseq
  %v192 = vshrl.u32 %v191, 7
  %v193 = vsub.s32 0, %v192
  %v194 = vrot.slane %v189, %v193
  %v196 = vld [vmem:[#allocation2] sm:$0xff]
  %vm197 = vcmask 261120
  %v199 = vsel %vm197, 0.0, 0
  %201 = vmatprep.subr.mxu0 0.0
  %202 = vmatpush1.msra.mxu0 0.0
  %203 = vmatprep.subr.mxu0 0.0
  %204 = vmatpush1.msra.mxu0 0.0
  %205 = vmatprep.subr.mxu0 0.0
  %206 = vmatpush1.msra.mxu0 0.0
  %207 = vmatprep.subr.mxu0 0.0
  %208 = vmatpush1.msra.mxu0 0.0
  %209 = vmatprep.subr.mxu0 0.0
  %210 = vmatpush1.msra.mxu0 0.0
  %211 = vmatprep.subr.mxu0 0.0
  %212 = vmatpush1.msra.mxu0 0.0
  %213 = vmatprep.subr.mxu0 0.0
  %214 = vmatpush1.msra.mxu0 0.0
  %215 = vmatprep.subr.mxu0 0.0
  %216 = vmatpush1.msra.mxu0 0.0
  %217 = vmatprep.subr.mxu0 0.0
  %218 = vmatpush1.msra.mxu0 0.0
  %219 = vmatprep.subr.mxu0 0.0
  %220 = vmatpush1.msra.mxu0 0.0
  %221 = vmatprep.subr.mxu0 0.0
  %222 = vmatpush1.msra.mxu0 0.0
  %223 = vmatprep.subr.mxu0 0.0
  %224 = vmatpush1.msra.mxu0 0.0
  %225 = vmatprep.subr.mxu0 0.0
  %226 = vmatpush1.msra.mxu0 %v183
  %227 = vmatprep.subr.mxu0 0.0
  %228 = vmatpush1.msra.mxu0 %v182
  %229 = vmatprep.subr.mxu0 0.0
  %230 = vmatpush1.msra.mxu0 %v181
  %231 = vmatprep.subr.mxu0 0.0
  %232 = vmatpush1.msra.mxu0 %v180
  %233 = vmatprep.subr.mxu0 0.0
  %234 = vmatpush2.msra.mxu0 0.0
  %235 = vmatprep.subr.mxu0 0.0
  %236 = vmatpush2.msra.mxu0 0.0
  %237 = vmatprep.subr.mxu0 0.0
  %238 = vmatpush2.msra.mxu0 0.0
  %239 = vmatprep.subr.mxu0 0.0
  %240 = vmatpush2.msra.mxu0 0.0
  %241 = vmatprep.subr.mxu0 0.0
  %242 = vmatpush2.msra.mxu0 0.0
  %243 = vmatprep.subr.mxu0 0.0
  %244 = vmatpush2.msra.mxu0 0.0
  %245 = vmatprep.subr.mxu0 0.0
  %246 = vmatpush2.msra.mxu0 0.0
  %247 = vmatprep.subr.mxu0 0.0
  %248 = vmatpush2.msra.mxu0 0.0
  %249 = vmatprep.subr.mxu0 0.0
  %250 = vmatpush2.msra.mxu0 0.0
  %251 = vmatprep.subr.mxu0 0.0
  %252 = vmatpush2.msra.mxu0 0.0
  %253 = vmatprep.subr.mxu0 0.0
  %254 = vmatpush2.msra.mxu0 0.0
  %255 = vmatprep.subr.mxu0 0.0
  %256 = vmatpush2.msra.mxu0 0.0
  %257 = vmatprep.subr.mxu0 0.0
  %258 = vmatpush2.msra.mxu0 0.0
  %259 = vmatprep.subr.mxu0 0.0
  %260 = vmatpush2.msra.mxu0 0.0
  %261 = vmatprep.subr.mxu0 0.0
  %262 = vmatpush2.msra.mxu0 0.0
  %263 = vmatprep.subr.mxu0 0.0
  %264 = vmatpush2.msra.mxu0 0.0
  %265 = vmatprep.mubr.f32.mxu0 0.0
  %266 = vmatmul.mubr.f32.gmra.mxu0 %v199
  %v267 = vpop.f32.mrf.mxu0
  %v268 = vadd.f32 0.0, %v267
  %v269 = vpop.f32.mrf.mxu0
  %270 = vdwg.mxu0
  %v271 = vadd.f32 %v196, %v268
  %v272 = vtanh.pop %v271
  %v273 = vxor.u32 %v271, 2147483648
  %v274 = vmul.f32 %v273, 1.442695
  %v275 = vpow.pop %v274
  %v276 = vadd.f32 %v275, 1.0
  %v277 = vrcp.pop %v276
  %v278 = vmul.f32 1.0, %v277
  %v279 = vsel %vm179, %v272, %v278
  %v280 = vmul.f32 %v279, 0.0
  %282 = vrot.lane.b32.xlu0 %v279, 64
  %v283 = vpop.permute.xlu0 %282
  %v285 = vmul.f32 %v279, %v283
  %287 = vrot.lane.b32.xlu0 %v285, 32
  %v288 = vpop.permute.xlu0 %287
  %v290 = vadd.f32 %v280, %v288
  %v291 = vtanh.pop %v290
  %293 = vrot.lane.b32.xlu0 %v291, 64
  %v294 = vpop.permute.xlu0 %293
  %v296 = vmul.f32 %v279, %v294
  %298 = vrot.lane.b32.xlu0 %v296, 32
  %v299 = vpop.permute.xlu0 %298
  %v300 = vsel %vm197, %v299, 0
  %302 = vmatprep.subr.mxu0 0.0
  %303 = vmatpush1.msra.mxu0 0.0
  %304 = vmatprep.subr.mxu0 0.0
  %305 = vmatpush1.msra.mxu0 0.0
  %306 = vmatprep.subr.mxu0 0.0
  %307 = vmatpush1.msra.mxu0 0.0
  %308 = vmatprep.subr.mxu0 0.0
  %309 = vmatpush1.msra.mxu0 0.0
  %310 = vmatprep.subr.mxu0 0.0
  %311 = vmatpush1.msra.mxu0 0.0
  %312 = vmatprep.subr.mxu0 0.0
  %313 = vmatpush1.msra.mxu0 0.0
  %314 = vmatprep.subr.mxu0 0.0
  %315 = vmatpush1.msra.mxu0 0.0
  %316 = vmatprep.subr.mxu0 0.0
  %317 = vmatpush1.msra.mxu0 0.0
  %318 = vmatprep.subr.mxu0 0.0
  %319 = vmatpush1.msra.mxu0 0.0
  %320 = vmatprep.subr.mxu0 0.0
  %321 = vmatpush1.msra.mxu0 0.0
  %322 = vmatprep.subr.mxu0 0.0
  %323 = vmatpush1.msra.mxu0 0.0
  %324 = vmatprep.subr.mxu0 0.0
  %325 = vmatpush1.msra.mxu0 0.0
  %326 = vmatprep.subr.mxu0 0.0
  %327 = vmatpush1.msra.mxu0 %v187
  %328 = vmatprep.subr.mxu0 0.0
  %329 = vmatpush1.msra.mxu0 %v186
  %330 = vmatprep.subr.mxu0 0.0
  %331 = vmatpush1.msra.mxu0 %v185
  %332 = vmatprep.subr.mxu0 0.0
  %333 = vmatpush1.msra.mxu0 %v184
  %334 = vmatprep.subr.mxu0 0.0
  %335 = vmatpush2.msra.mxu0 0.0
  %336 = vmatprep.subr.mxu0 0.0
  %337 = vmatpush2.msra.mxu0 0.0
  %338 = vmatprep.subr.mxu0 0.0
  %339 = vmatpush2.msra.mxu0 0.0
  %340 = vmatprep.subr.mxu0 0.0
  %341 = vmatpush2.msra.mxu0 0.0
  %342 = vmatprep.subr.mxu0 0.0
  %343 = vmatpush2.msra.mxu0 0.0
  %344 = vmatprep.subr.mxu0 0.0
  %345 = vmatpush2.msra.mxu0 0.0
  %346 = vmatprep.subr.mxu0 0.0
  %347 = vmatpush2.msra.mxu0 0.0
  %348 = vmatprep.subr.mxu0 0.0
  %349 = vmatpush2.msra.mxu0 0.0
  %350 = vmatprep.subr.mxu0 0.0
  %351 = vmatpush2.msra.mxu0 0.0
  %352 = vmatprep.subr.mxu0 0.0
  %353 = vmatpush2.msra.mxu0 0.0
  %354 = vmatprep.subr.mxu0 0.0
  %355 = vmatpush2.msra.mxu0 0.0
  %356 = vmatprep.subr.mxu0 0.0
  %357 = vmatpush2.msra.mxu0 0.0
  %358 = vmatprep.subr.mxu0 0.0
  %359 = vmatpush2.msra.mxu0 0.0
  %360 = vmatprep.subr.mxu0 0.0
  %361 = vmatpush2.msra.mxu0 0.0
  %362 = vmatprep.subr.mxu0 0.0
  %363 = vmatpush2.msra.mxu0 0.0
  %364 = vmatprep.subr.mxu0 0.0
  %365 = vmatpush2.msra.mxu0 0.0
  %366 = vmatprep.mubr.f32.mxu0 0.0
  %367 = vmatmul.mubr.f32.gmra.mxu0 %v300
  %v368 = vpop.f32.mrf.mxu0
  %v369 = vadd.f32 %v194, %v368
  %v370 = vpop.f32.mrf.mxu0
  %371 = vdwg.mxu0
  %372 = vst [vmem:[#allocation2] sm:$0xff] %v369
  %s373 = scalar_lea.vmem [#allocation2], 8
  %v374 = vld [vmem:[%s373] sm:$0xff]
  %375 = vmatprep.subr.mxu0 0.0
  %376 = vmatpush1.msra.mxu0 0.0
  %377 = vmatprep.subr.mxu0 0.0
  %378 = vmatpush1.msra.mxu0 0.0
  %379 = vmatprep.subr.mxu0 0.0
  %380 = vmatpush1.msra.mxu0 0.0
  %381 = vmatprep.subr.mxu0 0.0
  %382 = vmatpush1.msra.mxu0 0.0
  %383 = vmatprep.subr.mxu0 0.0
  %384 = vmatpush1.msra.mxu0 0.0
  %385 = vmatprep.subr.mxu0 0.0
  %386 = vmatpush1.msra.mxu0 0.0
  %387 = vmatprep.subr.mxu0 0.0
  %388 = vmatpush1.msra.mxu0 0.0
  %389 = vmatprep.subr.mxu0 0.0
  %390 = vmatpush1.msra.mxu0 0.0
  %391 = vmatprep.subr.mxu0 0.0
  %392 = vmatpush1.msra.mxu0 0.0
  %393 = vmatprep.subr.mxu0 0.0
  %394 = vmatpush1.msra.mxu0 0.0
  %395 = vmatprep.subr.mxu0 0.0
  %396 = vmatpush1.msra.mxu0 0.0
  %397 = vmatprep.subr.mxu0 0.0
  %398 = vmatpush1.msra.mxu0 0.0
  %399 = vmatprep.subr.mxu0 0.0
  %400 = vmatpush1.msra.mxu0 %v183
  %401 = vmatprep.subr.mxu0 0.0
  %402 = vmatpush1.msra.mxu0 %v182
  %403 = vmatprep.subr.mxu0 0.0
  %404 = vmatpush1.msra.mxu0 %v181
  %405 = vmatprep.subr.mxu0 0.0
  %406 = vmatpush1.msra.mxu0 %v180
  %407 = vmatprep.subr.mxu0 0.0
  %408 = vmatpush2.msra.mxu0 0.0
  %409 = vmatprep.subr.mxu0 0.0
  %410 = vmatpush2.msra.mxu0 0.0
  %411 = vmatprep.subr.mxu0 0.0
  %412 = vmatpush2.msra.mxu0 0.0
  %413 = vmatprep.subr.mxu0 0.0
  %414 = vmatpush2.msra.mxu0 0.0
  %415 = vmatprep.subr.mxu0 0.0
  %416 = vmatpush2.msra.mxu0 0.0
  %417 = vmatprep.subr.mxu0 0.0
  %418 = vmatpush2.msra.mxu0 0.0
  %419 = vmatprep.subr.mxu0 0.0
  %420 = vmatpush2.msra.mxu0 0.0
  %421 = vmatprep.subr.mxu0 0.0
  %422 = vmatpush2.msra.mxu0 0.0
  %423 = vmatprep.subr.mxu0 0.0
  %424 = vmatpush2.msra.mxu0 0.0
  %425 = vmatprep.subr.mxu0 0.0
  %426 = vmatpush2.msra.mxu0 0.0
  %427 = vmatprep.subr.mxu0 0.0
  %428 = vmatpush2.msra.mxu0 0.0
  %429 = vmatprep.subr.mxu0 0.0
  %430 = vmatpush2.msra.mxu0 0.0
  %431 = vmatprep.subr.mxu0 0.0
  %432 = vmatpush2.msra.mxu0 0.0
  %433 = vmatprep.subr.mxu0 0.0
  %434 = vmatpush2.msra.mxu0 0.0
  %435 = vmatprep.subr.mxu0 0.0
  %436 = vmatpush2.msra.mxu0 0.0
  %437 = vmatprep.subr.mxu0 0.0
  %438 = vmatpush2.msra.mxu0 0.0
  %439 = vmatprep.mubr.f32.mxu0 0.0
  %440 = vmatmul.mubr.f32.gmra.mxu0 %v300
  %v441 = vpop.f32.mrf.mxu0
  %v442 = vadd.f32 0.0, %v441
  %v443 = vpop.f32.mrf.mxu0
  %444 = vdwg.mxu0
  %v445 = vadd.f32 %v374, %v442
  %v446 = vtanh.pop %v445
  %v447 = vxor.u32 %v445, 2147483648
  %v448 = vmul.f32 %v447, 1.442695
  %v449 = vpow.pop %v448
  %v450 = vadd.f32 %v449, 1.0
  %v451 = vrcp.pop %v450
  %v452 = vmul.f32 1.0, %v451
  %v453 = vsel %vm179, %v446, %v452
  %v454 = vmul.f32 %v453, %v290
  %456 = vrot.lane.b32.xlu0 %v453, 64
  %v457 = vpop.permute.xlu0 %456
  %v459 = vmul.f32 %v453, %v457
  %461 = vrot.lane.b32.xlu0 %v459, 32
  %v462 = vpop.permute.xlu0 %461
  %v464 = vadd.f32 %v454, %v462
  %v465 = vtanh.pop %v464
  %467 = vrot.lane.b32.xlu0 %v465, 64
  %v468 = vpop.permute.xlu0 %467
  %v470 = vmul.f32 %v453, %v468
  %472 = vrot.lane.b32.xlu0 %v470, 32
  %v473 = vpop.permute.xlu0 %472
  %v474 = vsel %vm197, %v473, 0
  %476 = vmatprep.subr.mxu0 0.0
  %477 = vmatpush1.msra.mxu0 0.0
  %478 = vmatprep.subr.mxu0 0.0
  %479 = vmatpush1.msra.mxu0 0.0
  %480 = vmatprep.subr.mxu0 0.0
  %481 = vmatpush1.msra.mxu0 0.0
  %482 = vmatprep.subr.mxu0 0.0
  %483 = vmatpush1.msra.mxu0 0.0
  %484 = vmatprep.subr.mxu0 0.0
  %485 = vmatpush1.msra.mxu0 0.0
  %486 = vmatprep.subr.mxu0 0.0
  %487 = vmatpush1.msra.mxu0 0.0
  %488 = vmatprep.subr.mxu0 0.0
  %489 = vmatpush1.msra.mxu0 0.0
  %490 = vmatprep.subr.mxu0 0.0
  %491 = vmatpush1.msra.mxu0 0.0
  %492 = vmatprep.subr.mxu0 0.0
  %493 = vmatpush1.msra.mxu0 0.0
  %494 = vmatprep.subr.mxu0 0.0
  %495 = vmatpush1.msra.mxu0 0.0
  %496 = vmatprep.subr.mxu0 0.0
  %497 = vmatpush1.msra.mxu0 0.0
  %498 = vmatprep.subr.mxu0 0.0
  %499 = vmatpush1.msra.mxu0 0.0
  %500 = vmatprep.subr.mxu0 0.0
  %501 = vmatpush1.msra.mxu0 %v187
  %502 = vmatprep.subr.mxu0 0.0
  %503 = vmatpush1.msra.mxu0 %v186
  %504 = vmatprep.subr.mxu0 0.0
  %505 = vmatpush1.msra.mxu0 %v185
  %506 = vmatprep.subr.mxu0 0.0
  %507 = vmatpush1.msra.mxu0 %v184
  %508 = vmatprep.subr.mxu0 0.0
  %509 = vmatpush2.msra.mxu0 0.0
  %510 = vmatprep.subr.mxu0 0.0
  %511 = vmatpush2.msra.mxu0 0.0
  %512 = vmatprep.subr.mxu0 0.0
  %513 = vmatpush2.msra.mxu0 0.0
  %514 = vmatprep.subr.mxu0 0.0
  %515 = vmatpush2.msra.mxu0 0.0
  %516 = vmatprep.subr.mxu0 0.0
  %517 = vmatpush2.msra.mxu0 0.0
  %518 = vmatprep.subr.mxu0 0.0
  %519 = vmatpush2.msra.mxu0 0.0
  %520 = vmatprep.subr.mxu0 0.0
  %521 = vmatpush2.msra.mxu0 0.0
  %522 = vmatprep.subr.mxu0 0.0
  %523 = vmatpush2.msra.mxu0 0.0
  %524 = vmatprep.subr.mxu0 0.0
  %525 = vmatpush2.msra.mxu0 0.0
  %526 = vmatprep.subr.mxu0 0.0
  %527 = vmatpush2.msra.mxu0 0.0
  %528 = vmatprep.subr.mxu0 0.0
  %529 = vmatpush2.msra.mxu0 0.0
  %530 = vmatprep.subr.mxu0 0.0
  %531 = vmatpush2.msra.mxu0 0.0
  %532 = vmatprep.subr.mxu0 0.0
  %533 = vmatpush2.msra.mxu0 0.0
  %534 = vmatprep.subr.mxu0 0.0
  %535 = vmatpush2.msra.mxu0 0.0
  %536 = vmatprep.subr.mxu0 0.0
  %537 = vmatpush2.msra.mxu0 0.0
  %538 = vmatprep.subr.mxu0 0.0
  %539 = vmatpush2.msra.mxu0 0.0
  %540 = vmatprep.mubr.f32.mxu0 0.0
  %541 = vmatmul.mubr.f32.gmra.mxu0 %v474
  %v542 = vpop.f32.mrf.mxu0
  %v543 = vadd.f32 %v194, %v542
  %v544 = vpop.f32.mrf.mxu0
  %545 = vdwg.mxu0
  %546 = vst [vmem:[%s373] sm:$0xff] %v543
  %s547 = scalar_lea.vmem [#allocation2], 16
  %v548 = vld [vmem:[%s547] sm:$0xff]
  %549 = vmatprep.subr.mxu0 0.0
  %550 = vmatpush1.msra.mxu0 0.0
  %551 = vmatprep.subr.mxu0 0.0
  %552 = vmatpush1.msra.mxu0 0.0
  %553 = vmatprep.subr.mxu0 0.0
  %554 = vmatpush1.msra.mxu0 0.0
  %555 = vmatprep.subr.mxu0 0.0
  %556 = vmatpush1.msra.mxu0 0.0
  %557 = vmatprep.subr.mxu0 0.0
  %558 = vmatpush1.msra.mxu0 0.0
  %559 = vmatprep.subr.mxu0 0.0
  %560 = vmatpush1.msra.mxu0 0.0
  %561 = vmatprep.subr.mxu0 0.0
  %562 = vmatpush1.msra.mxu0 0.0
  %563 = vmatprep.subr.mxu0 0.0
  %564 = vmatpush1.msra.mxu0 0.0
  %565 = vmatprep.subr.mxu0 0.0
  %566 = vmatpush1.msra.mxu0 0.0
  %567 = vmatprep.subr.mxu0 0.0
  %568 = vmatpush1.msra.mxu0 0.0
  %569 = vmatprep.subr.mxu0 0.0
  %570 = vmatpush1.msra.mxu0 0.0
  %571 = vmatprep.subr.mxu0 0.0
  %572 = vmatpush1.msra.mxu0 0.0
  %573 = vmatprep.subr.mxu0 0.0
  %574 = vmatpush1.msra.mxu0 %v183
  %575 = vmatprep.subr.mxu0 0.0
  %576 = vmatpush1.msra.mxu0 %v182
  %577 = vmatprep.subr.mxu0 0.0
  %578 = vmatpush1.msra.mxu0 %v181
  %579 = vmatprep.subr.mxu0 0.0
  %580 = vmatpush1.msra.mxu0 %v180
  %581 = vmatprep.subr.mxu0 0.0
  %582 = vmatpush2.msra.mxu0 0.0
  %583 = vmatprep.subr.mxu0 0.0
  %584 = vmatpush2.msra.mxu0 0.0
  %585 = vmatprep.subr.mxu0 0.0
  %586 = vmatpush2.msra.mxu0 0.0
  %587 = vmatprep.subr.mxu0 0.0
  %588 = vmatpush2.msra.mxu0 0.0
  %589 = vmatprep.subr.mxu0 0.0
  %590 = vmatpush2.msra.mxu0 0.0
  %591 = vmatprep.subr.mxu0 0.0
  %592 = vmatpush2.msra.mxu0 0.0
  %593 = vmatprep.subr.mxu0 0.0
  %594 = vmatpush2.msra.mxu0 0.0
  %595 = vmatprep.subr.mxu0 0.0
  %596 = vmatpush2.msra.mxu0 0.0
  %597 = vmatprep.subr.mxu0 0.0
  %598 = vmatpush2.msra.mxu0 0.0
  %599 = vmatprep.subr.mxu0 0.0
  %600 = vmatpush2.msra.mxu0 0.0
  %601 = vmatprep.subr.mxu0 0.0
  %602 = vmatpush2.msra.mxu0 0.0
  %603 = vmatprep.subr.mxu0 0.0
  %604 = vmatpush2.msra.mxu0 0.0
  %605 = vmatprep.subr.mxu0 0.0
  %606 = vmatpush2.msra.mxu0 0.0
  %607 = vmatprep.subr.mxu0 0.0
  %608 = vmatpush2.msra.mxu0 0.0
  %609 = vmatprep.subr.mxu0 0.0
  %610 = vmatpush2.msra.mxu0 0.0
  %611 = vmatprep.subr.mxu0 0.0
  %612 = vmatpush2.msra.mxu0 0.0
  %613 = vmatprep.mubr.f32.mxu0 0.0
  %614 = vmatmul.mubr.f32.gmra.mxu0 %v474
  %v615 = vpop.f32.mrf.mxu0
  %v616 = vadd.f32 0.0, %v615
  %v617 = vpop.f32.mrf.mxu0
  %618 = vdwg.mxu0
  %v619 = vadd.f32 %v548, %v616
  %v620 = vtanh.pop %v619
  %v621 = vxor.u32 %v619, 2147483648
  %v622 = vmul.f32 %v621, 1.442695
  %v623 = vpow.pop %v622
  %v624 = vadd.f32 %v623, 1.0
  %v625 = vrcp.pop %v624
  %v626 = vmul.f32 1.0, %v625
  %v627 = vsel %vm179, %v620, %v626
  %v628 = vmul.f32 %v627, %v464
  %630 = vrot.lane.b32.xlu0 %v627, 64
  %v631 = vpop.permute.xlu0 %630
  %v633 = vmul.f32 %v627, %v631
  %635 = vrot.lane.b32.xlu0 %v633, 32
  %v636 = vpop.permute.xlu0 %635
  %v638 = vadd.f32 %v628, %v636
  %v639 = vtanh.pop %v638
  %641 = vrot.lane.b32.xlu0 %v639, 64
  %v642 = vpop.permute.xlu0 %641
  %v644 = vmul.f32 %v627, %v642
  %646 = vrot.lane.b32.xlu0 %v644, 32
  %v647 = vpop.permute.xlu0 %646
  %v648 = vsel %vm197, %v647, 0
  %650 = vmatprep.subr.mxu0 0.0
  %651 = vmatpush1.msra.mxu0 0.0
  %652 = vmatprep.subr.mxu0 0.0
  %653 = vmatpush1.msra.mxu0 0.0
  %654 = vmatprep.subr.mxu0 0.0
  %655 = vmatpush1.msra.mxu0 0.0
  %656 = vmatprep.subr.mxu0 0.0
  %657 = vmatpush1.msra.mxu0 0.0
  %658 = vmatprep.subr.mxu0 0.0
  %659 = vmatpush1.msra.mxu0 0.0
  %660 = vmatprep.subr.mxu0 0.0
  %661 = vmatpush1.msra.mxu0 0.0
  %662 = vmatprep.subr.mxu0 0.0
  %663 = vmatpush1.msra.mxu0 0.0
  %664 = vmatprep.subr.mxu0 0.0
  %665 = vmatpush1.msra.mxu0 0.0
  %666 = vmatprep.subr.mxu0 0.0
  %667 = vmatpush1.msra.mxu0 0.0
  %668 = vmatprep.subr.mxu0 0.0
  %669 = vmatpush1.msra.mxu0 0.0
  %670 = vmatprep.subr.mxu0 0.0
  %671 = vmatpush1.msra.mxu0 0.0
  %672 = vmatprep.subr.mxu0 0.0
  %673 = vmatpush1.msra.mxu0 0.0
  %674 = vmatprep.subr.mxu0 0.0
  %675 = vmatpush1.msra.mxu0 %v187
  %676 = vmatprep.subr.mxu0 0.0
  %677 = vmatpush1.msra.mxu0 %v186
  %678 = vmatprep.subr.mxu0 0.0
  %679 = vmatpush1.msra.mxu0 %v185
  %680 = vmatprep.subr.mxu0 0.0
  %681 = vmatpush1.msra.mxu0 %v184
  %682 = vmatprep.subr.mxu0 0.0
  %683 = vmatpush2.msra.mxu0 0.0
  %684 = vmatprep.subr.mxu0 0.0
  %685 = vmatpush2.msra.mxu0 0.0
  %686 = vmatprep.subr.mxu0 0.0
  %687 = vmatpush2.msra.mxu0 0.0
  %688 = vmatprep.subr.mxu0 0.0
  %689 = vmatpush2.msra.mxu0 0.0
  %690 = vmatprep.subr.mxu0 0.0
  %691 = vmatpush2.msra.mxu0 0.0
  %692 = vmatprep.subr.mxu0 0.0
  %693 = vmatpush2.msra.mxu0 0.0
  %694 = vmatprep.subr.mxu0 0.0
  %695 = vmatpush2.msra.mxu0 0.0
  %696 = vmatprep.subr.mxu0 0.0
  %697 = vmatpush2.msra.mxu0 0.0
  %698 = vmatprep.subr.mxu0 0.0
  %699 = vmatpush2.msra.mxu0 0.0
  %700 = vmatprep.subr.mxu0 0.0
  %701 = vmatpush2.msra.mxu0 0.0
  %702 = vmatprep.subr.mxu0 0.0
  %703 = vmatpush2.msra.mxu0 0.0
  %704 = vmatprep.subr.mxu0 0.0
  %705 = vmatpush2.msra.mxu0 0.0
  %706 = vmatprep.subr.mxu0 0.0
  %707 = vmatpush2.msra.mxu0 0.0
  %708 = vmatprep.subr.mxu0 0.0
  %709 = vmatpush2.msra.mxu0 0.0
  %710 = vmatprep.subr.mxu0 0.0
  %711 = vmatpush2.msra.mxu0 0.0
  %712 = vmatprep.subr.mxu0 0.0
  %713 = vmatpush2.msra.mxu0 0.0
  %714 = vmatprep.mubr.f32.mxu0 0.0
  %715 = vmatmul.mubr.f32.gmra.mxu0 %v648
  %v716 = vpop.f32.mrf.mxu0
  %v717 = vadd.f32 %v194, %v716
  %v718 = vpop.f32.mrf.mxu0
  %719 = vdwg.mxu0
  %720 = vst [vmem:[%s547] sm:$0xff] %v717
  %s721 = scalar_lea.vmem [#allocation2], 24
  %v722 = vld [vmem:[%s721] sm:$0xff]
  %723 = vmatprep.subr.mxu0 0.0
  %724 = vmatpush1.msra.mxu0 0.0
  %725 = vmatprep.subr.mxu0 0.0
  %726 = vmatpush1.msra.mxu0 0.0
  %727 = vmatprep.subr.mxu0 0.0
  %728 = vmatpush1.msra.mxu0 0.0
  %729 = vmatprep.subr.mxu0 0.0
  %730 = vmatpush1.msra.mxu0 0.0
  %731 = vmatprep.subr.mxu0 0.0
  %732 = vmatpush1.msra.mxu0 0.0
  %733 = vmatprep.subr.mxu0 0.0
  %734 = vmatpush1.msra.mxu0 0.0
  %735 = vmatprep.subr.mxu0 0.0
  %736 = vmatpush1.msra.mxu0 0.0
  %737 = vmatprep.subr.mxu0 0.0
  %738 = vmatpush1.msra.mxu0 0.0
  %739 = vmatprep.subr.mxu0 0.0
  %740 = vmatpush1.msra.mxu0 0.0
  %741 = vmatprep.subr.mxu0 0.0
  %742 = vmatpush1.msra.mxu0 0.0
  %743 = vmatprep.subr.mxu0 0.0
  %744 = vmatpush1.msra.mxu0 0.0
  %745 = vmatprep.subr.mxu0 0.0
  %746 = vmatpush1.msra.mxu0 0.0
  %747 = vmatprep.subr.mxu0 0.0
  %748 = vmatpush1.msra.mxu0 %v183
  %749 = vmatprep.subr.mxu0 0.0
  %750 = vmatpush1.msra.mxu0 %v182
  %751 = vmatprep.subr.mxu0 0.0
  %752 = vmatpush1.msra.mxu0 %v181
  %753 = vmatprep.subr.mxu0 0.0
  %754 = vmatpush1.msra.mxu0 %v180
  %755 = vmatprep.subr.mxu0 0.0
  %756 = vmatpush2.msra.mxu0 0.0
  %757 = vmatprep.subr.mxu0 0.0
  %758 = vmatpush2.msra.mxu0 0.0
  %759 = vmatprep.subr.mxu0 0.0
  %760 = vmatpush2.msra.mxu0 0.0
  %761 = vmatprep.subr.mxu0 0.0
  %762 = vmatpush2.msra.mxu0 0.0
  %763 = vmatprep.subr.mxu0 0.0
  %764 = vmatpush2.msra.mxu0 0.0
  %765 = vmatprep.subr.mxu0 0.0
  %766 = vmatpush2.msra.mxu0 0.0
  %767 = vmatprep.subr.mxu0 0.0
  %768 = vmatpush2.msra.mxu0 0.0
  %769 = vmatprep.subr.mxu0 0.0
  %770 = vmatpush2.msra.mxu0 0.0
  %771 = vmatprep.subr.mxu0 0.0
  %772 = vmatpush2.msra.mxu0 0.0
  %773 = vmatprep.subr.mxu0 0.0
  %774 = vmatpush2.msra.mxu0 0.0
  %775 = vmatprep.subr.mxu0 0.0
  %776 = vmatpush2.msra.mxu0 0.0
  %777 = vmatprep.subr.mxu0 0.0
  %778 = vmatpush2.msra.mxu0 0.0
  %779 = vmatprep.subr.mxu0 0.0
  %780 = vmatpush2.msra.mxu0 0.0
  %781 = vmatprep.subr.mxu0 0.0
  %782 = vmatpush2.msra.mxu0 0.0
  %783 = vmatprep.subr.mxu0 0.0
  %784 = vmatpush2.msra.mxu0 0.0
  %785 = vmatprep.subr.mxu0 0.0
  %786 = vmatpush2.msra.mxu0 0.0
  %787 = vmatprep.mubr.f32.mxu0 0.0
  %788 = vmatmul.mubr.f32.gmra.mxu0 %v648
  %v789 = vpop.f32.mrf.mxu0
  %v790 = vadd.f32 0.0, %v789
  %v791 = vpop.f32.mrf.mxu0
  %792 = vdwg.mxu0
  %v793 = vadd.f32 %v722, %v790
  %v794 = vtanh.pop %v793
  %v795 = vxor.u32 %v793, 2147483648
  %v796 = vmul.f32 %v795, 1.442695
  %v797 = vpow.pop %v796
  %v798 = vadd.f32 %v797, 1.0
  %v799 = vrcp.pop %v798
  %v800 = vmul.f32 1.0, %v799
  %v801 = vsel %vm179, %v794, %v800
  %v802 = vmul.f32 %v801, %v638
  %804 = vrot.lane.b32.xlu0 %v801, 64
  %v805 = vpop.permute.xlu0 %804
  %v807 = vmul.f32 %v801, %v805
  %809 = vrot.lane.b32.xlu0 %v807, 32
  %v810 = vpop.permute.xlu0 %809
  %v812 = vadd.f32 %v802, %v810
  %v813 = vtanh.pop %v812
  %815 = vrot.lane.b32.xlu0 %v813, 64
  %v816 = vpop.permute.xlu0 %815
  %v818 = vmul.f32 %v801, %v816
  %820 = vrot.lane.b32.xlu0 %v818, 32
  %v821 = vpop.permute.xlu0 %820
  %v822 = vsel %vm197, %v821, 0
  %824 = vmatprep.subr.mxu0 0.0
  %825 = vmatpush1.msra.mxu0 0.0
  %826 = vmatprep.subr.mxu0 0.0
  %827 = vmatpush1.msra.mxu0 0.0
  %828 = vmatprep.subr.mxu0 0.0
  %829 = vmatpush1.msra.mxu0 0.0
  %830 = vmatprep.subr.mxu0 0.0
  %831 = vmatpush1.msra.mxu0 0.0
  %832 = vmatprep.subr.mxu0 0.0
  %833 = vmatpush1.msra.mxu0 0.0
  %834 = vmatprep.subr.mxu0 0.0
  %835 = vmatpush1.msra.mxu0 0.0
  %836 = vmatprep.subr.mxu0 0.0
  %837 = vmatpush1.msra.mxu0 0.0
  %838 = vmatprep.subr.mxu0 0.0
  %839 = vmatpush1.msra.mxu0 0.0
  %840 = vmatprep.subr.mxu0 0.0
  %841 = vmatpush1.msra.mxu0 0.0
  %842 = vmatprep.subr.mxu0 0.0
  %843 = vmatpush1.msra.mxu0 0.0
  %844 = vmatprep.subr.mxu0 0.0
  %845 = vmatpush1.msra.mxu0 0.0
  %846 = vmatprep.subr.mxu0 0.0
  %847 = vmatpush1.msra.mxu0 0.0
  %848 = vmatprep.subr.mxu0 0.0
  %849 = vmatpush1.msra.mxu0 %v187
  %850 = vmatprep.subr.mxu0 0.0
  %851 = vmatpush1.msra.mxu0 %v186
  %852 = vmatprep.subr.mxu0 0.0
  %853 = vmatpush1.msra.mxu0 %v185
  %854 = vmatprep.subr.mxu0 0.0
  %855 = vmatpush1.msra.mxu0 %v184
  %856 = vmatprep.subr.mxu0 0.0
  %857 = vmatpush2.msra.mxu0 0.0
  %858 = vmatprep.subr.mxu0 0.0
  %859 = vmatpush2.msra.mxu0 0.0
  %860 = vmatprep.subr.mxu0 0.0
  %861 = vmatpush2.msra.mxu0 0.0
  %862 = vmatprep.subr.mxu0 0.0
  %863 = vmatpush2.msra.mxu0 0.0
  %864 = vmatprep.subr.mxu0 0.0
  %865 = vmatpush2.msra.mxu0 0.0
  %866 = vmatprep.subr.mxu0 0.0
  %867 = vmatpush2.msra.mxu0 0.0
  %868 = vmatprep.subr.mxu0 0.0
  %869 = vmatpush2.msra.mxu0 0.0
  %870 = vmatprep.subr.mxu0 0.0
  %871 = vmatpush2.msra.mxu0 0.0
  %872 = vmatprep.subr.mxu0 0.0
  %873 = vmatpush2.msra.mxu0 0.0
  %874 = vmatprep.subr.mxu0 0.0
  %875 = vmatpush2.msra.mxu0 0.0
  %876 = vmatprep.subr.mxu0 0.0
  %877 = vmatpush2.msra.mxu0 0.0
  %878 = vmatprep.subr.mxu0 0.0
  %879 = vmatpush2.msra.mxu0 0.0
  %880 = vmatprep.subr.mxu0 0.0
  %881 = vmatpush2.msra.mxu0 0.0
  %882 = vmatprep.subr.mxu0 0.0
  %883 = vmatpush2.msra.mxu0 0.0
  %884 = vmatprep.subr.mxu0 0.0
  %885 = vmatpush2.msra.mxu0 0.0
  %886 = vmatprep.subr.mxu0 0.0
  %887 = vmatpush2.msra.mxu0 0.0
  %888 = vmatprep.mubr.f32.mxu0 0.0
  %889 = vmatmul.mubr.f32.gmra.mxu0 %v822
  %v890 = vpop.f32.mrf.mxu0
  %v891 = vadd.f32 %v194, %v890
  %v892 = vpop.f32.mrf.mxu0
  %893 = vdwg.mxu0
  %894 = vst [vmem:[%s721] sm:$0xff] %v891
  %s895 = scalar_lea.vmem [#allocation2], 32
  %v896 = vld [vmem:[%s895] sm:$0xff]
  %897 = vmatprep.subr.mxu0 0.0
  %898 = vmatpush1.msra.mxu0 0.0
  %899 = vmatprep.subr.mxu0 0.0
  %900 = vmatpush1.msra.mxu0 0.0
  %901 = vmatprep.subr.mxu0 0.0
  %902 = vmatpush1.msra.mxu0 0.0
  %903 = vmatprep.subr.mxu0 0.0
  %904 = vmatpush1.msra.mxu0 0.0
  %905 = vmatprep.subr.mxu0 0.0
  %906 = vmatpush1.msra.mxu0 0.0
  %907 = vmatprep.subr.mxu0 0.0
  %908 = vmatpush1.msra.mxu0 0.0
  %909 = vmatprep.subr.mxu0 0.0
  %910 = vmatpush1.msra.mxu0 0.0
  %911 = vmatprep.subr.mxu0 0.0
  %912 = vmatpush1.msra.mxu0 0.0
  %913 = vmatprep.subr.mxu0 0.0
  %914 = vmatpush1.msra.mxu0 0.0
  %915 = vmatprep.subr.mxu0 0.0
  %916 = vmatpush1.msra.mxu0 0.0
  %917 = vmatprep.subr.mxu0 0.0
  %918 = vmatpush1.msra.mxu0 0.0
  %919 = vmatprep.subr.mxu0 0.0
  %920 = vmatpush1.msra.mxu0 0.0
  %921 = vmatprep.subr.mxu0 0.0
  %922 = vmatpush1.msra.mxu0 %v183
  %923 = vmatprep.subr.mxu0 0.0
  %924 = vmatpush1.msra.mxu0 %v182
  %925 = vmatprep.subr.mxu0 0.0
  %926 = vmatpush1.msra.mxu0 %v181
  %927 = vmatprep.subr.mxu0 0.0
  %928 = vmatpush1.msra.mxu0 %v180
  %929 = vmatprep.subr.mxu0 0.0
  %930 = vmatpush2.msra.mxu0 0.0
  %931 = vmatprep.subr.mxu0 0.0
  %932 = vmatpush2.msra.mxu0 0.0
  %933 = vmatprep.subr.mxu0 0.0
  %934 = vmatpush2.msra.mxu0 0.0
  %935 = vmatprep.subr.mxu0 0.0
  %936 = vmatpush2.msra.mxu0 0.0
  %937 = vmatprep.subr.mxu0 0.0
  %938 = vmatpush2.msra.mxu0 0.0
  %939 = vmatprep.subr.mxu0 0.0
  %940 = vmatpush2.msra.mxu0 0.0
  %941 = vmatprep.subr.mxu0 0.0
  %942 = vmatpush2.msra.mxu0 0.0
  %943 = vmatprep.subr.mxu0 0.0
  %944 = vmatpush2.msra.mxu0 0.0
  %945 = vmatprep.subr.mxu0 0.0
  %946 = vmatpush2.msra.mxu0 0.0
  %947 = vmatprep.subr.mxu0 0.0
  %948 = vmatpush2.msra.mxu0 0.0
  %949 = vmatprep.subr.mxu0 0.0
  %950 = vmatpush2.msra.mxu0 0.0
  %951 = vmatprep.subr.mxu0 0.0
  %952 = vmatpush2.msra.mxu0 0.0
  %953 = vmatprep.subr.mxu0 0.0
  %954 = vmatpush2.msra.mxu0 0.0
  %955 = vmatprep.subr.mxu0 0.0
  %956 = vmatpush2.msra.mxu0 0.0
  %957 = vmatprep.subr.mxu0 0.0
  %958 = vmatpush2.msra.mxu0 0.0
  %959 = vmatprep.subr.mxu0 0.0
  %960 = vmatpush2.msra.mxu0 0.0
  %961 = vmatprep.mubr.f32.mxu0 0.0
  %962 = vmatmul.mubr.f32.gmra.mxu0 %v822
  %v963 = vpop.f32.mrf.mxu0
  %v964 = vadd.f32 0.0, %v963
  %v965 = vpop.f32.mrf.mxu0
  %966 = vdwg.mxu0
  %v967 = vadd.f32 %v896, %v964
  %v968 = vtanh.pop %v967
  %v969 = vxor.u32 %v967, 2147483648
  %v970 = vmul.f32 %v969, 1.442695
  %v971 = vpow.pop %v970
  %v972 = vadd.f32 %v971, 1.0
  %v973 = vrcp.pop %v972
  %v974 = vmul.f32 1.0, %v973
  %v975 = vsel %vm179, %v968, %v974
  %v976 = vmul.f32 %v975, %v812
  %978 = vrot.lane.b32.xlu0 %v975, 64
  %v979 = vpop.permute.xlu0 %978
  %v981 = vmul.f32 %v975, %v979
  %983 = vrot.lane.b32.xlu0 %v981, 32
  %v984 = vpop.permute.xlu0 %983
  %v986 = vadd.f32 %v976, %v984
  %v987 = vtanh.pop %v986
  %989 = vrot.lane.b32.xlu0 %v987, 64
  %v990 = vpop.permute.xlu0 %989
  %v992 = vmul.f32 %v975, %v990
  %994 = vrot.lane.b32.xlu0 %v992, 32
  %v995 = vpop.permute.xlu0 %994
  %v996 = vsel %vm197, %v995, 0
  %998 = vmatprep.subr.mxu0 0.0
  %999 = vmatpush1.msra.mxu0 0.0
  %1000 = vmatprep.subr.mxu0 0.0
  %1001 = vmatpush1.msra.mxu0 0.0
  %1002 = vmatprep.subr.mxu0 0.0
  %1003 = vmatpush1.msra.mxu0 0.0
  %1004 = vmatprep.subr.mxu0 0.0
  %1005 = vmatpush1.msra.mxu0 0.0
  %1006 = vmatprep.subr.mxu0 0.0
  %1007 = vmatpush1.msra.mxu0 0.0
  %1008 = vmatprep.subr.mxu0 0.0
  %1009 = vmatpush1.msra.mxu0 0.0
  %1010 = vmatprep.subr.mxu0 0.0
  %1011 = vmatpush1.msra.mxu0 0.0
  %1012 = vmatprep.subr.mxu0 0.0
  %1013 = vmatpush1.msra.mxu0 0.0
  %1014 = vmatprep.subr.mxu0 0.0
  %1015 = vmatpush1.msra.mxu0 0.0
  %1016 = vmatprep.subr.mxu0 0.0
  %1017 = vmatpush1.msra.mxu0 0.0
  %1018 = vmatprep.subr.mxu0 0.0
  %1019 = vmatpush1.msra.mxu0 0.0
  %1020 = vmatprep.subr.mxu0 0.0
  %1021 = vmatpush1.msra.mxu0 0.0
  %1022 = vmatprep.subr.mxu0 0.0
  %1023 = vmatpush1.msra.mxu0 %v187
  %1024 = vmatprep.subr.mxu0 0.0
  %1025 = vmatpush1.msra.mxu0 %v186
  %1026 = vmatprep.subr.mxu0 0.0
  %1027 = vmatpush1.msra.mxu0 %v185
  %1028 = vmatprep.subr.mxu0 0.0
  %1029 = vmatpush1.msra.mxu0 %v184
  %1030 = vmatprep.subr.mxu0 0.0
  %1031 = vmatpush2.msra.mxu0 0.0
  %1032 = vmatprep.subr.mxu0 0.0
  %1033 = vmatpush2.msra.mxu0 0.0
  %1034 = vmatprep.subr.mxu0 0.0
  %1035 = vmatpush2.msra.mxu0 0.0
  %1036 = vmatprep.subr.mxu0 0.0
  %1037 = vmatpush2.msra.mxu0 0.0
  %1038 = vmatprep.subr.mxu0 0.0
  %1039 = vmatpush2.msra.mxu0 0.0
  %1040 = vmatprep.subr.mxu0 0.0
  %1041 = vmatpush2.msra.mxu0 0.0
  %1042 = vmatprep.subr.mxu0 0.0
  %1043 = vmatpush2.msra.mxu0 0.0
  %1044 = vmatprep.subr.mxu0 0.0
  %1045 = vmatpush2.msra.mxu0 0.0
  %1046 = vmatprep.subr.mxu0 0.0
  %1047 = vmatpush2.msra.mxu0 0.0
  %1048 = vmatprep.subr.mxu0 0.0
  %1049 = vmatpush2.msra.mxu0 0.0
  %1050 = vmatprep.subr.mxu0 0.0
  %1051 = vmatpush2.msra.mxu0 0.0
  %1052 = vmatprep.subr.mxu0 0.0
  %1053 = vmatpush2.msra.mxu0 0.0
  %1054 = vmatprep.subr.mxu0 0.0
  %1055 = vmatpush2.msra.mxu0 0.0
  %1056 = vmatprep.subr.mxu0 0.0
  %1057 = vmatpush2.msra.mxu0 0.0
  %1058 = vmatprep.subr.mxu0 0.0
  %1059 = vmatpush2.msra.mxu0 0.0
  %1060 = vmatprep.subr.mxu0 0.0
  %1061 = vmatpush2.msra.mxu0 0.0
  %1062 = vmatprep.mubr.f32.mxu0 0.0
  %1063 = vmatmul.mubr.f32.gmra.mxu0 %v996
  %v1064 = vpop.f32.mrf.mxu0
  %v1065 = vadd.f32 %v194, %v1064
  %v1066 = vpop.f32.mrf.mxu0
  %1067 = vdwg.mxu0
  %1068 = vst [vmem:[%s895] sm:$0xff] %v1065
  %s1069 = scalar_lea.vmem [#allocation2], 40
  %v1070 = vld [vmem:[%s1069] sm:$0xff]
  %1071 = vmatprep.subr.mxu0 0.0
  %1072 = vmatpush1.msra.mxu0 0.0
  %1073 = vmatprep.subr.mxu0 0.0
  %1074 = vmatpush1.msra.mxu0 0.0
  %1075 = vmatprep.subr.mxu0 0.0
  %1076 = vmatpush1.msra.mxu0 0.0
  %1077 = vmatprep.subr.mxu0 0.0
  %1078 = vmatpush1.msra.mxu0 0.0
  %1079 = vmatprep.subr.mxu0 0.0
  %1080 = vmatpush1.msra.mxu0 0.0
  %1081 = vmatprep.subr.mxu0 0.0
  %1082 = vmatpush1.msra.mxu0 0.0
  %1083 = vmatprep.subr.mxu0 0.0
  %1084 = vmatpush1.msra.mxu0 0.0
  %1085 = vmatprep.subr.mxu0 0.0
  %1086 = vmatpush1.msra.mxu0 0.0
  %1087 = vmatprep.subr.mxu0 0.0
  %1088 = vmatpush1.msra.mxu0 0.0
  %1089 = vmatprep.subr.mxu0 0.0
  %1090 = vmatpush1.msra.mxu0 0.0
  %1091 = vmatprep.subr.mxu0 0.0
  %1092 = vmatpush1.msra.mxu0 0.0
  %1093 = vmatprep.subr.mxu0 0.0
  %1094 = vmatpush1.msra.mxu0 0.0
  %1095 = vmatprep.subr.mxu0 0.0
  %1096 = vmatpush1.msra.mxu0 %v183
  %1097 = vmatprep.subr.mxu0 0.0
  %1098 = vmatpush1.msra.mxu0 %v182
  %1099 = vmatprep.subr.mxu0 0.0
  %1100 = vmatpush1.msra.mxu0 %v181
  %1101 = vmatprep.subr.mxu0 0.0
  %1102 = vmatpush1.msra.mxu0 %v180
  %1103 = vmatprep.subr.mxu0 0.0
  %1104 = vmatpush2.msra.mxu0 0.0
  %1105 = vmatprep.subr.mxu0 0.0
  %1106 = vmatpush2.msra.mxu0 0.0
  %1107 = vmatprep.subr.mxu0 0.0
  %1108 = vmatpush2.msra.mxu0 0.0
  %1109 = vmatprep.subr.mxu0 0.0
  %1110 = vmatpush2.msra.mxu0 0.0
  %1111 = vmatprep.subr.mxu0 0.0
  %1112 = vmatpush2.msra.mxu0 0.0
  %1113 = vmatprep.subr.mxu0 0.0
  %1114 = vmatpush2.msra.mxu0 0.0
  %1115 = vmatprep.subr.mxu0 0.0
  %1116 = vmatpush2.msra.mxu0 0.0
  %1117 = vmatprep.subr.mxu0 0.0
  %1118 = vmatpush2.msra.mxu0 0.0
  %1119 = vmatprep.subr.mxu0 0.0
  %1120 = vmatpush2.msra.mxu0 0.0
  %1121 = vmatprep.subr.mxu0 0.0
  %1122 = vmatpush2.msra.mxu0 0.0
  %1123 = vmatprep.subr.mxu0 0.0
  %1124 = vmatpush2.msra.mxu0 0.0
  %1125 = vmatprep.subr.mxu0 0.0
  %1126 = vmatpush2.msra.mxu0 0.0
  %1127 = vmatprep.subr.mxu0 0.0
  %1128 = vmatpush2.msra.mxu0 0.0
  %1129 = vmatprep.subr.mxu0 0.0
  %1130 = vmatpush2.msra.mxu0 0.0
  %1131 = vmatprep.subr.mxu0 0.0
  %1132 = vmatpush2.msra.mxu0 0.0
  %1133 = vmatprep.subr.mxu0 0.0
  %1134 = vmatpush2.msra.mxu0 0.0
  %1135 = vmatprep.mubr.f32.mxu0 0.0
  %1136 = vmatmul.mubr.f32.gmra.mxu0 %v996
  %v1137 = vpop.f32.mrf.mxu0
  %v1138 = vadd.f32 0.0, %v1137
  %v1139 = vpop.f32.mrf.mxu0
  %1140 = vdwg.mxu0
  %v1141 = vadd.f32 %v1070, %v1138
  %v1142 = vtanh.pop %v1141
  %v1143 = vxor.u32 %v1141, 2147483648
  %v1144 = vmul.f32 %v1143, 1.442695
  %v1145 = vpow.pop %v1144
  %v1146 = vadd.f32 %v1145, 1.0
  %v1147 = vrcp.pop %v1146
  %v1148 = vmul.f32 1.0, %v1147
  %v1149 = vsel %vm179, %v1142, %v1148
  %v1150 = vmul.f32 %v1149, %v986
  %1152 = vrot.lane.b32.xlu0 %v1149, 64
  %v1153 = vpop.permute.xlu0 %1152
  %v1155 = vmul.f32 %v1149, %v1153
  %1157 = vrot.lane.b32.xlu0 %v1155, 32
  %v1158 = vpop.permute.xlu0 %1157
  %v1160 = vadd.f32 %v1150, %v1158
  %v1161 = vtanh.pop %v1160
  %1163 = vrot.lane.b32.xlu0 %v1161, 64
  %v1164 = vpop.permute.xlu0 %1163
  %v1166 = vmul.f32 %v1149, %v1164
  %1168 = vrot.lane.b32.xlu0 %v1166, 32
  %v1169 = vpop.permute.xlu0 %1168
  %v1170 = vsel %vm197, %v1169, 0
  %1172 = vmatprep.subr.mxu0 0.0
  %1173 = vmatpush1.msra.mxu0 0.0
  %1174 = vmatprep.subr.mxu0 0.0
  %1175 = vmatpush1.msra.mxu0 0.0
  %1176 = vmatprep.subr.mxu0 0.0
  %1177 = vmatpush1.msra.mxu0 0.0
  %1178 = vmatprep.subr.mxu0 0.0
  %1179 = vmatpush1.msra.mxu0 0.0
  %1180 = vmatprep.subr.mxu0 0.0
  %1181 = vmatpush1.msra.mxu0 0.0
  %1182 = vmatprep.subr.mxu0 0.0
  %1183 = vmatpush1.msra.mxu0 0.0
  %1184 = vmatprep.subr.mxu0 0.0
  %1185 = vmatpush1.msra.mxu0 0.0
  %1186 = vmatprep.subr.mxu0 0.0
  %1187 = vmatpush1.msra.mxu0 0.0
  %1188 = vmatprep.subr.mxu0 0.0
  %1189 = vmatpush1.msra.mxu0 0.0
  %1190 = vmatprep.subr.mxu0 0.0
  %1191 = vmatpush1.msra.mxu0 0.0
  %1192 = vmatprep.subr.mxu0 0.0
  %1193 = vmatpush1.msra.mxu0 0.0
  %1194 = vmatprep.subr.mxu0 0.0
  %1195 = vmatpush1.msra.mxu0 0.0
  %1196 = vmatprep.subr.mxu0 0.0
  %1197 = vmatpush1.msra.mxu0 %v187
  %1198 = vmatprep.subr.mxu0 0.0
  %1199 = vmatpush1.msra.mxu0 %v186
  %1200 = vmatprep.subr.mxu0 0.0
  %1201 = vmatpush1.msra.mxu0 %v185
  %1202 = vmatprep.subr.mxu0 0.0
  %1203 = vmatpush1.msra.mxu0 %v184
  %1204 = vmatprep.subr.mxu0 0.0
  %1205 = vmatpush2.msra.mxu0 0.0
  %1206 = vmatprep.subr.mxu0 0.0
  %1207 = vmatpush2.msra.mxu0 0.0
  %1208 = vmatprep.subr.mxu0 0.0
  %1209 = vmatpush2.msra.mxu0 0.0
  %1210 = vmatprep.subr.mxu0 0.0
  %1211 = vmatpush2.msra.mxu0 0.0
  %1212 = vmatprep.subr.mxu0 0.0
  %1213 = vmatpush2.msra.mxu0 0.0
  %1214 = vmatprep.subr.mxu0 0.0
  %1215 = vmatpush2.msra.mxu0 0.0
  %1216 = vmatprep.subr.mxu0 0.0
  %1217 = vmatpush2.msra.mxu0 0.0
  %1218 = vmatprep.subr.mxu0 0.0
  %1219 = vmatpush2.msra.mxu0 0.0
  %1220 = vmatprep.subr.mxu0 0.0
  %1221 = vmatpush2.msra.mxu0 0.0
  %1222 = vmatprep.subr.mxu0 0.0
  %1223 = vmatpush2.msra.mxu0 0.0
  %1224 = vmatprep.subr.mxu0 0.0
  %1225 = vmatpush2.msra.mxu0 0.0
  %1226 = vmatprep.subr.mxu0 0.0
  %1227 = vmatpush2.msra.mxu0 0.0
  %1228 = vmatprep.subr.mxu0 0.0
  %1229 = vmatpush2.msra.mxu0 0.0
  %1230 = vmatprep.subr.mxu0 0.0
  %1231 = vmatpush2.msra.mxu0 0.0
  %1232 = vmatprep.subr.mxu0 0.0
  %1233 = vmatpush2.msra.mxu0 0.0
  %1234 = vmatprep.subr.mxu0 0.0
  %1235 = vmatpush2.msra.mxu0 0.0
  %1236 = vmatprep.mubr.f32.mxu0 0.0
  %1237 = vmatmul.mubr.f32.gmra.mxu0 %v1170
  %v1238 = vpop.f32.mrf.mxu0
  %v1239 = vadd.f32 %v194, %v1238
  %v1240 = vpop.f32.mrf.mxu0
  %1241 = vdwg.mxu0
  %1242 = vst [vmem:[%s1069] sm:$0xff] %v1239
  %s1243 = scalar_lea.vmem [#allocation2], 48
  %v1244 = vld [vmem:[%s1243] sm:$0xff]
  %1245 = vmatprep.subr.mxu0 0.0
  %1246 = vmatpush1.msra.mxu0 0.0
  %1247 = vmatprep.subr.mxu0 0.0
  %1248 = vmatpush1.msra.mxu0 0.0
  %1249 = vmatprep.subr.mxu0 0.0
  %1250 = vmatpush1.msra.mxu0 0.0
  %1251 = vmatprep.subr.mxu0 0.0
  %1252 = vmatpush1.msra.mxu0 0.0
  %1253 = vmatprep.subr.mxu0 0.0
  %1254 = vmatpush1.msra.mxu0 0.0
  %1255 = vmatprep.subr.mxu0 0.0
  %1256 = vmatpush1.msra.mxu0 0.0
  %1257 = vmatprep.subr.mxu0 0.0
  %1258 = vmatpush1.msra.mxu0 0.0
  %1259 = vmatprep.subr.mxu0 0.0
  %1260 = vmatpush1.msra.mxu0 0.0
  %1261 = vmatprep.subr.mxu0 0.0
  %1262 = vmatpush1.msra.mxu0 0.0
  %1263 = vmatprep.subr.mxu0 0.0
  %1264 = vmatpush1.msra.mxu0 0.0
  %1265 = vmatprep.subr.mxu0 0.0
  %1266 = vmatpush1.msra.mxu0 0.0
  %1267 = vmatprep.subr.mxu0 0.0
  %1268 = vmatpush1.msra.mxu0 0.0
  %1269 = vmatprep.subr.mxu0 0.0
  %1270 = vmatpush1.msra.mxu0 %v183
  %1271 = vmatprep.subr.mxu0 0.0
  %1272 = vmatpush1.msra.mxu0 %v182
  %1273 = vmatprep.subr.mxu0 0.0
  %1274 = vmatpush1.msra.mxu0 %v181
  %1275 = vmatprep.subr.mxu0 0.0
  %1276 = vmatpush1.msra.mxu0 %v180
  %1277 = vmatprep.subr.mxu0 0.0
  %1278 = vmatpush2.msra.mxu0 0.0
  %1279 = vmatprep.subr.mxu0 0.0
  %1280 = vmatpush2.msra.mxu0 0.0
  %1281 = vmatprep.subr.mxu0 0.0
  %1282 = vmatpush2.msra.mxu0 0.0
  %1283 = vmatprep.subr.mxu0 0.0
  %1284 = vmatpush2.msra.mxu0 0.0
  %1285 = vmatprep.subr.mxu0 0.0
  %1286 = vmatpush2.msra.mxu0 0.0
  %1287 = vmatprep.subr.mxu0 0.0
  %1288 = vmatpush2.msra.mxu0 0.0
  %1289 = vmatprep.subr.mxu0 0.0
  %1290 = vmatpush2.msra.mxu0 0.0
  %1291 = vmatprep.subr.mxu0 0.0
  %1292 = vmatpush2.msra.mxu0 0.0
  %1293 = vmatprep.subr.mxu0 0.0
  %1294 = vmatpush2.msra.mxu0 0.0
  %1295 = vmatprep.subr.mxu0 0.0
  %1296 = vmatpush2.msra.mxu0 0.0
  %1297 = vmatprep.subr.mxu0 0.0
  %1298 = vmatpush2.msra.mxu0 0.0
  %1299 = vmatprep.subr.mxu0 0.0
  %1300 = vmatpush2.msra.mxu0 0.0
  %1301 = vmatprep.subr.mxu0 0.0
  %1302 = vmatpush2.msra.mxu0 0.0
  %1303 = vmatprep.subr.mxu0 0.0
  %1304 = vmatpush2.msra.mxu0 0.0
  %1305 = vmatprep.subr.mxu0 0.0
  %1306 = vmatpush2.msra.mxu0 0.0
  %1307 = vmatprep.subr.mxu0 0.0
  %1308 = vmatpush2.msra.mxu0 0.0
  %1309 = vmatprep.mubr.f32.mxu0 0.0
  %1310 = vmatmul.mubr.f32.gmra.mxu0 %v1170
  %v1311 = vpop.f32.mrf.mxu0
  %v1312 = vadd.f32 0.0, %v1311
  %v1313 = vpop.f32.mrf.mxu0
  %1314 = vdwg.mxu0
  %v1315 = vadd.f32 %v1244, %v1312
  %v1316 = vtanh.pop %v1315
  %v1317 = vxor.u32 %v1315, 2147483648
  %v1318 = vmul.f32 %v1317, 1.442695
  %v1319 = vpow.pop %v1318
  %v1320 = vadd.f32 %v1319, 1.0
  %v1321 = vrcp.pop %v1320
  %v1322 = vmul.f32 1.0, %v1321
  %v1323 = vsel %vm179, %v1316, %v1322
  %v1324 = vmul.f32 %v1323, %v1160
  %1326 = vrot.lane.b32.xlu0 %v1323, 64
  %v1327 = vpop.permute.xlu0 %1326
  %v1329 = vmul.f32 %v1323, %v1327
  %1331 = vrot.lane.b32.xlu0 %v1329, 32
  %v1332 = vpop.permute.xlu0 %1331
  %v1334 = vadd.f32 %v1324, %v1332
  %v1335 = vtanh.pop %v1334
  %1337 = vrot.lane.b32.xlu0 %v1335, 64
  %v1338 = vpop.permute.xlu0 %1337
  %v1340 = vmul.f32 %v1323, %v1338
  %1342 = vrot.lane.b32.xlu0 %v1340, 32
  %v1343 = vpop.permute.xlu0 %1342
  %v1344 = vsel %vm197, %v1343, 0
  %1346 = vmatprep.subr.mxu0 0.0
  %1347 = vmatpush1.msra.mxu0 0.0
  %1348 = vmatprep.subr.mxu0 0.0
  %1349 = vmatpush1.msra.mxu0 0.0
  %1350 = vmatprep.subr.mxu0 0.0
  %1351 = vmatpush1.msra.mxu0 0.0
  %1352 = vmatprep.subr.mxu0 0.0
  %1353 = vmatpush1.msra.mxu0 0.0
  %1354 = vmatprep.subr.mxu0 0.0
  %1355 = vmatpush1.msra.mxu0 0.0
  %1356 = vmatprep.subr.mxu0 0.0
  %1357 = vmatpush1.msra.mxu0 0.0
  %1358 = vmatprep.subr.mxu0 0.0
  %1359 = vmatpush1.msra.mxu0 0.0
  %1360 = vmatprep.subr.mxu0 0.0
  %1361 = vmatpush1.msra.mxu0 0.0
  %1362 = vmatprep.subr.mxu0 0.0
  %1363 = vmatpush1.msra.mxu0 0.0
  %1364 = vmatprep.subr.mxu0 0.0
  %1365 = vmatpush1.msra.mxu0 0.0
  %1366 = vmatprep.subr.mxu0 0.0
  %1367 = vmatpush1.msra.mxu0 0.0
  %1368 = vmatprep.subr.mxu0 0.0
  %1369 = vmatpush1.msra.mxu0 0.0
  %1370 = vmatprep.subr.mxu0 0.0
  %1371 = vmatpush1.msra.mxu0 %v187
  %1372 = vmatprep.subr.mxu0 0.0
  %1373 = vmatpush1.msra.mxu0 %v186
  %1374 = vmatprep.subr.mxu0 0.0
  %1375 = vmatpush1.msra.mxu0 %v185
  %1376 = vmatprep.subr.mxu0 0.0
  %1377 = vmatpush1.msra.mxu0 %v184
  %1378 = vmatprep.subr.mxu0 0.0
  %1379 = vmatpush2.msra.mxu0 0.0
  %1380 = vmatprep.subr.mxu0 0.0
  %1381 = vmatpush2.msra.mxu0 0.0
  %1382 = vmatprep.subr.mxu0 0.0
  %1383 = vmatpush2.msra.mxu0 0.0
  %1384 = vmatprep.subr.mxu0 0.0
  %1385 = vmatpush2.msra.mxu0 0.0
  %1386 = vmatprep.subr.mxu0 0.0
  %1387 = vmatpush2.msra.mxu0 0.0
  %1388 = vmatprep.subr.mxu0 0.0
  %1389 = vmatpush2.msra.mxu0 0.0
  %1390 = vmatprep.subr.mxu0 0.0
  %1391 = vmatpush2.msra.mxu0 0.0
  %1392 = vmatprep.subr.mxu0 0.0
  %1393 = vmatpush2.msra.mxu0 0.0
  %1394 = vmatprep.subr.mxu0 0.0
  %1395 = vmatpush2.msra.mxu0 0.0
  %1396 = vmatprep.subr.mxu0 0.0
  %1397 = vmatpush2.msra.mxu0 0.0
  %1398 = vmatprep.subr.mxu0 0.0
  %1399 = vmatpush2.msra.mxu0 0.0
  %1400 = vmatprep.subr.mxu0 0.0
  %1401 = vmatpush2.msra.mxu0 0.0
  %1402 = vmatprep.subr.mxu0 0.0
  %1403 = vmatpush2.msra.mxu0 0.0
  %1404 = vmatprep.subr.mxu0 0.0
  %1405 = vmatpush2.msra.mxu0 0.0
  %1406 = vmatprep.subr.mxu0 0.0
  %1407 = vmatpush2.msra.mxu0 0.0
  %1408 = vmatprep.subr.mxu0 0.0
  %1409 = vmatpush2.msra.mxu0 0.0
  %1410 = vmatprep.mubr.f32.mxu0 0.0
  %1411 = vmatmul.mubr.f32.gmra.mxu0 %v1344
  %v1412 = vpop.f32.mrf.mxu0
  %v1413 = vadd.f32 %v194, %v1412
  %v1414 = vpop.f32.mrf.mxu0
  %1415 = vdwg.mxu0
  %1416 = vst [vmem:[%s1243] sm:$0xff] %v1413
  %s1417 = scalar_lea.vmem [#allocation2], 56
  %v1418 = vld [vmem:[%s1417] sm:$0xff]
  %1419 = vmatprep.subr.mxu0 0.0
  %1420 = vmatpush1.msra.mxu0 0.0
  %1421 = vmatprep.subr.mxu0 0.0
  %1422 = vmatpush1.msra.mxu0 0.0
  %1423 = vmatprep.subr.mxu0 0.0
  %1424 = vmatpush1.msra.mxu0 0.0
  %1425 = vmatprep.subr.mxu0 0.0
  %1426 = vmatpush1.msra.mxu0 0.0
  %1427 = vmatprep.subr.mxu0 0.0
  %1428 = vmatpush1.msra.mxu0 0.0
  %1429 = vmatprep.subr.mxu0 0.0
  %1430 = vmatpush1.msra.mxu0 0.0
  %1431 = vmatprep.subr.mxu0 0.0
  %1432 = vmatpush1.msra.mxu0 0.0
  %1433 = vmatprep.subr.mxu0 0.0
  %1434 = vmatpush1.msra.mxu0 0.0
  %1435 = vmatprep.subr.mxu0 0.0
  %1436 = vmatpush1.msra.mxu0 0.0
  %1437 = vmatprep.subr.mxu0 0.0
  %1438 = vmatpush1.msra.mxu0 0.0
  %1439 = vmatprep.subr.mxu0 0.0
  %1440 = vmatpush1.msra.mxu0 0.0
  %1441 = vmatprep.subr.mxu0 0.0
  %1442 = vmatpush1.msra.mxu0 0.0
  %1443 = vmatprep.subr.mxu0 0.0
  %1444 = vmatpush1.msra.mxu0 %v183
  %1445 = vmatprep.subr.mxu0 0.0
  %1446 = vmatpush1.msra.mxu0 %v182
  %1447 = vmatprep.subr.mxu0 0.0
  %1448 = vmatpush1.msra.mxu0 %v181
  %1449 = vmatprep.subr.mxu0 0.0
  %1450 = vmatpush1.msra.mxu0 %v180
  %1451 = vmatprep.subr.mxu0 0.0
  %1452 = vmatpush2.msra.mxu0 0.0
  %1453 = vmatprep.subr.mxu0 0.0
  %1454 = vmatpush2.msra.mxu0 0.0
  %1455 = vmatprep.subr.mxu0 0.0
  %1456 = vmatpush2.msra.mxu0 0.0
  %1457 = vmatprep.subr.mxu0 0.0
  %1458 = vmatpush2.msra.mxu0 0.0
  %1459 = vmatprep.subr.mxu0 0.0
  %1460 = vmatpush2.msra.mxu0 0.0
  %1461 = vmatprep.subr.mxu0 0.0
  %1462 = vmatpush2.msra.mxu0 0.0
  %1463 = vmatprep.subr.mxu0 0.0
  %1464 = vmatpush2.msra.mxu0 0.0
  %1465 = vmatprep.subr.mxu0 0.0
  %1466 = vmatpush2.msra.mxu0 0.0
  %1467 = vmatprep.subr.mxu0 0.0
  %1468 = vmatpush2.msra.mxu0 0.0
  %1469 = vmatprep.subr.mxu0 0.0
  %1470 = vmatpush2.msra.mxu0 0.0
  %1471 = vmatprep.subr.mxu0 0.0
  %1472 = vmatpush2.msra.mxu0 0.0
  %1473 = vmatprep.subr.mxu0 0.0
  %1474 = vmatpush2.msra.mxu0 0.0
  %1475 = vmatprep.subr.mxu0 0.0
  %1476 = vmatpush2.msra.mxu0 0.0
  %1477 = vmatprep.subr.mxu0 0.0
  %1478 = vmatpush2.msra.mxu0 0.0
  %1479 = vmatprep.subr.mxu0 0.0
  %1480 = vmatpush2.msra.mxu0 0.0
  %1481 = vmatprep.subr.mxu0 0.0
  %1482 = vmatpush2.msra.mxu0 0.0
  %1483 = vmatprep.mubr.f32.mxu0 0.0
  %1484 = vmatmul.mubr.f32.gmra.mxu0 %v1344
  %v1485 = vpop.f32.mrf.mxu0
  %v1486 = vadd.f32 0.0, %v1485
  %v1487 = vpop.f32.mrf.mxu0
  %1488 = vdwg.mxu0
  %v1489 = vadd.f32 %v1418, %v1486
  %v1490 = vtanh.pop %v1489
  %v1491 = vxor.u32 %v1489, 2147483648
  %v1492 = vmul.f32 %v1491, 1.442695
  %v1493 = vpow.pop %v1492
  %v1494 = vadd.f32 %v1493, 1.0
  %v1495 = vrcp.pop %v1494
  %v1496 = vmul.f32 1.0, %v1495
  %v1497 = vsel %vm179, %v1490, %v1496
  %v1498 = vmul.f32 %v1497, %v1334
  %1500 = vrot.lane.b32.xlu0 %v1497, 64
  %v1501 = vpop.permute.xlu0 %1500
  %v1503 = vmul.f32 %v1497, %v1501
  %1505 = vrot.lane.b32.xlu0 %v1503, 32
  %v1506 = vpop.permute.xlu0 %1505
  %v1508 = vadd.f32 %v1498, %v1506
  %v1509 = vtanh.pop %v1508
  %1511 = vrot.lane.b32.xlu0 %v1509, 64
  %v1512 = vpop.permute.xlu0 %1511
  %v1514 = vmul.f32 %v1497, %v1512
  %1516 = vrot.lane.b32.xlu0 %v1514, 32
  %v1517 = vpop.permute.xlu0 %1516
  %v1518 = vsel %vm197, %v1517, 0
  %1520 = vmatprep.subr.mxu0 0.0
  %1521 = vmatpush1.msra.mxu0 0.0
  %1522 = vmatprep.subr.mxu0 0.0
  %1523 = vmatpush1.msra.mxu0 0.0
  %1524 = vmatprep.subr.mxu0 0.0
  %1525 = vmatpush1.msra.mxu0 0.0
  %1526 = vmatprep.subr.mxu0 0.0
  %1527 = vmatpush1.msra.mxu0 0.0
  %1528 = vmatprep.subr.mxu0 0.0
  %1529 = vmatpush1.msra.mxu0 0.0
  %1530 = vmatprep.subr.mxu0 0.0
  %1531 = vmatpush1.msra.mxu0 0.0
  %1532 = vmatprep.subr.mxu0 0.0
  %1533 = vmatpush1.msra.mxu0 0.0
  %1534 = vmatprep.subr.mxu0 0.0
  %1535 = vmatpush1.msra.mxu0 0.0
  %1536 = vmatprep.subr.mxu0 0.0
  %1537 = vmatpush1.msra.mxu0 0.0
  %1538 = vmatprep.subr.mxu0 0.0
  %1539 = vmatpush1.msra.mxu0 0.0
  %1540 = vmatprep.subr.mxu0 0.0
  %1541 = vmatpush1.msra.mxu0 0.0
  %1542 = vmatprep.subr.mxu0 0.0
  %1543 = vmatpush1.msra.mxu0 0.0
  %1544 = vmatprep.subr.mxu0 0.0
  %1545 = vmatpush1.msra.mxu0 %v187
  %1546 = vmatprep.subr.mxu0 0.0
  %1547 = vmatpush1.msra.mxu0 %v186
  %1548 = vmatprep.subr.mxu0 0.0
  %1549 = vmatpush1.msra.mxu0 %v185
  %1550 = vmatprep.subr.mxu0 0.0
  %1551 = vmatpush1.msra.mxu0 %v184
  %1552 = vmatprep.subr.mxu0 0.0
  %1553 = vmatpush2.msra.mxu0 0.0
  %1554 = vmatprep.subr.mxu0 0.0
  %1555 = vmatpush2.msra.mxu0 0.0
  %1556 = vmatprep.subr.mxu0 0.0
  %1557 = vmatpush2.msra.mxu0 0.0
  %1558 = vmatprep.subr.mxu0 0.0
  %1559 = vmatpush2.msra.mxu0 0.0
  %1560 = vmatprep.subr.mxu0 0.0
  %1561 = vmatpush2.msra.mxu0 0.0
  %1562 = vmatprep.subr.mxu0 0.0
  %1563 = vmatpush2.msra.mxu0 0.0
  %1564 = vmatprep.subr.mxu0 0.0
  %1565 = vmatpush2.msra.mxu0 0.0
  %1566 = vmatprep.subr.mxu0 0.0
  %1567 = vmatpush2.msra.mxu0 0.0
  %1568 = vmatprep.subr.mxu0 0.0
  %1569 = vmatpush2.msra.mxu0 0.0
  %1570 = vmatprep.subr.mxu0 0.0
  %1571 = vmatpush2.msra.mxu0 0.0
  %1572 = vmatprep.subr.mxu0 0.0
  %1573 = vmatpush2.msra.mxu0 0.0
  %1574 = vmatprep.subr.mxu0 0.0
  %1575 = vmatpush2.msra.mxu0 0.0
  %1576 = vmatprep.subr.mxu0 0.0
  %1577 = vmatpush2.msra.mxu0 0.0
  %1578 = vmatprep.subr.mxu0 0.0
  %1579 = vmatpush2.msra.mxu0 0.0
  %1580 = vmatprep.subr.mxu0 0.0
  %1581 = vmatpush2.msra.mxu0 0.0
  %1582 = vmatprep.subr.mxu0 0.0
  %1583 = vmatpush2.msra.mxu0 0.0
  %1584 = vmatprep.mubr.f32.mxu0 0.0
  %1585 = vmatmul.mubr.f32.gmra.mxu0 %v1518
  %v1586 = vpop.f32.mrf.mxu0
  %v1587 = vadd.f32 %v194, %v1586
  %v1588 = vpop.f32.mrf.mxu0
  %1589 = vdwg.mxu0
  %1590 = vst [vmem:[%s1417] sm:$0xff] %v1587
  %s1591 = scalar_lea.vmem %s2, 32
  %v1592 = vld [vmem:[%s1591] sm:$0xff]
  %v1593 = vld [vmem:[%s1591 + $0x8] sm:$0xff]
  %v1594 = vld [vmem:[%s1591 + $0x10] sm:$0xff]
  %v1595 = vld [vmem:[%s1591 + $0x18] sm:$0xff]
  %v1596 = vld [vmem:[#allocation2] sm:$0xff]
  %1597 = vmatprep.subr.mxu0 0.0
  %1598 = vmatpush1.msra.mxu0 0.0
  %1599 = vmatprep.subr.mxu0 0.0
  %1600 = vmatpush1.msra.mxu0 0.0
  %1601 = vmatprep.subr.mxu0 0.0
  %1602 = vmatpush1.msra.mxu0 0.0
  %1603 = vmatprep.subr.mxu0 0.0
  %1604 = vmatpush1.msra.mxu0 0.0
  %1605 = vmatprep.subr.mxu0 0.0
  %1606 = vmatpush1.msra.mxu0 0.0
  %1607 = vmatprep.subr.mxu0 0.0
  %1608 = vmatpush1.msra.mxu0 0.0
  %1609 = vmatprep.subr.mxu0 0.0
  %1610 = vmatpush1.msra.mxu0 0.0
  %1611 = vmatprep.subr.mxu0 0.0
  %1612 = vmatpush1.msra.mxu0 0.0
  %1613 = vmatprep.subr.mxu0 0.0
  %1614 = vmatpush1.msra.mxu0 0.0
  %1615 = vmatprep.subr.mxu0 0.0
  %1616 = vmatpush1.msra.mxu0 0.0
  %1617 = vmatprep.subr.mxu0 0.0
  %1618 = vmatpush1.msra.mxu0 0.0
  %1619 = vmatprep.subr.mxu0 0.0
  %1620 = vmatpush1.msra.mxu0 0.0
  %1621 = vmatprep.subr.mxu0 0.0
  %1622 = vmatpush1.msra.mxu0 %v1595
  %1623 = vmatprep.subr.mxu0 0.0
  %1624 = vmatpush1.msra.mxu0 %v1594
  %1625 = vmatprep.subr.mxu0 0.0
  %1626 = vmatpush1.msra.mxu0 %v1593
  %1627 = vmatprep.subr.mxu0 0.0
  %1628 = vmatpush1.msra.mxu0 %v1592
  %1629 = vmatprep.subr.mxu0 0.0
  %1630 = vmatpush2.msra.mxu0 0.0
  %1631 = vmatprep.subr.mxu0 0.0
  %1632 = vmatpush2.msra.mxu0 0.0
  %1633 = vmatprep.subr.mxu0 0.0
  %1634 = vmatpush2.msra.mxu0 0.0
  %1635 = vmatprep.subr.mxu0 0.0
  %1636 = vmatpush2.msra.mxu0 0.0
  %1637 = vmatprep.subr.mxu0 0.0
  %1638 = vmatpush2.msra.mxu0 0.0
  %1639 = vmatprep.subr.mxu0 0.0
  %1640 = vmatpush2.msra.mxu0 0.0
  %1641 = vmatprep.subr.mxu0 0.0
  %1642 = vmatpush2.msra.mxu0 0.0
  %1643 = vmatprep.subr.mxu0 0.0
  %1644 = vmatpush2.msra.mxu0 0.0
  %1645 = vmatprep.subr.mxu0 0.0
  %1646 = vmatpush2.msra.mxu0 0.0
  %1647 = vmatprep.subr.mxu0 0.0
  %1648 = vmatpush2.msra.mxu0 0.0
  %1649 = vmatprep.subr.mxu0 0.0
  %1650 = vmatpush2.msra.mxu0 0.0
  %1651 = vmatprep.subr.mxu0 0.0
  %1652 = vmatpush2.msra.mxu0 0.0
  %1653 = vmatprep.subr.mxu0 0.0
  %1654 = vmatpush2.msra.mxu0 0.0
  %1655 = vmatprep.subr.mxu0 0.0
  %1656 = vmatpush2.msra.mxu0 0.0
  %1657 = vmatprep.subr.mxu0 0.0
  %1658 = vmatpush2.msra.mxu0 0.0
  %1659 = vmatprep.subr.mxu0 0.0
  %1660 = vmatpush2.msra.mxu0 0.0
  %1661 = vmatprep.mubr.f32.mxu0 0.0
  %1662 = vmatmul.mubr.f32.gmra.mxu0 %v199
  %v1663 = vpop.f32.mrf.mxu0
  %v1664 = vadd.f32 0.0, %v1663
  %v1665 = vpop.f32.mrf.mxu0
  %1666 = vdwg.mxu0
  %v1667 = vadd.f32 %v1596, %v1664
  %v1668 = vtanh.pop %v1667
  %v1669 = vxor.u32 %v1667, 2147483648
  %v1670 = vmul.f32 %v1669, 1.442695
  %v1671 = vpow.pop %v1670
  %v1672 = vadd.f32 %v1671, 1.0
  %v1673 = vrcp.pop %v1672
  %v1674 = vmul.f32 1.0, %v1673
  %v1675 = vsel %vm179, %v1668, %v1674
  %v1676 = vmul.f32 %v1675, 0.0
  %1678 = vrot.lane.b32.xlu0 %v1675, 64
  %v1679 = vpop.permute.xlu0 %1678
  %v1681 = vmul.f32 %v1675, %v1679
  %1683 = vrot.lane.b32.xlu0 %v1681, 32
  %v1684 = vpop.permute.xlu0 %1683
  %v1686 = vadd.f32 %v1676, %v1684
  %v1687 = vtanh.pop %v1686
  %1689 = vrot.lane.b32.xlu0 %v1687, 64
  %v1690 = vpop.permute.xlu0 %1689
  %v1692 = vmul.f32 %v1675, %v1690
  %v1693 = vld [vmem:[%s373] sm:$0xff]
  %1695 = vrot.lane.b32.xlu0 %v1692, 32
  %v1696 = vpop.permute.xlu0 %1695
  %v1697 = vsel %vm197, %v1696, 0
  %1699 = vmatprep.subr.mxu0 0.0
  %1700 = vmatpush1.msra.mxu0 0.0
  %1701 = vmatprep.subr.mxu0 0.0
  %1702 = vmatpush1.msra.mxu0 0.0
  %1703 = vmatprep.subr.mxu0 0.0
  %1704 = vmatpush1.msra.mxu0 0.0
  %1705 = vmatprep.subr.mxu0 0.0
  %1706 = vmatpush1.msra.mxu0 0.0
  %1707 = vmatprep.subr.mxu0 0.0
  %1708 = vmatpush1.msra.mxu0 0.0
  %1709 = vmatprep.subr.mxu0 0.0
  %1710 = vmatpush1.msra.mxu0 0.0
  %1711 = vmatprep.subr.mxu0 0.0
  %1712 = vmatpush1.msra.mxu0 0.0
  %1713 = vmatprep.subr.mxu0 0.0
  %1714 = vmatpush1.msra.mxu0 0.0
  %1715 = vmatprep.subr.mxu0 0.0
  %1716 = vmatpush1.msra.mxu0 0.0
  %1717 = vmatprep.subr.mxu0 0.0
  %1718 = vmatpush1.msra.mxu0 0.0
  %1719 = vmatprep.subr.mxu0 0.0
  %1720 = vmatpush1.msra.mxu0 0.0
  %1721 = vmatprep.subr.mxu0 0.0
  %1722 = vmatpush1.msra.mxu0 0.0
  %1723 = vmatprep.subr.mxu0 0.0
  %1724 = vmatpush1.msra.mxu0 %v1595
  %1725 = vmatprep.subr.mxu0 0.0
  %1726 = vmatpush1.msra.mxu0 %v1594
  %1727 = vmatprep.subr.mxu0 0.0
  %1728 = vmatpush1.msra.mxu0 %v1593
  %1729 = vmatprep.subr.mxu0 0.0
  %1730 = vmatpush1.msra.mxu0 %v1592
  %1731 = vmatprep.subr.mxu0 0.0
  %1732 = vmatpush2.msra.mxu0 0.0
  %1733 = vmatprep.subr.mxu0 0.0
  %1734 = vmatpush2.msra.mxu0 0.0
  %1735 = vmatprep.subr.mxu0 0.0
  %1736 = vmatpush2.msra.mxu0 0.0
  %1737 = vmatprep.subr.mxu0 0.0
  %1738 = vmatpush2.msra.mxu0 0.0
  %1739 = vmatprep.subr.mxu0 0.0
  %1740 = vmatpush2.msra.mxu0 0.0
  %1741 = vmatprep.subr.mxu0 0.0
  %1742 = vmatpush2.msra.mxu0 0.0
  %1743 = vmatprep.subr.mxu0 0.0
  %1744 = vmatpush2.msra.mxu0 0.0
  %1745 = vmatprep.subr.mxu0 0.0
  %1746 = vmatpush2.msra.mxu0 0.0
  %1747 = vmatprep.subr.mxu0 0.0
  %1748 = vmatpush2.msra.mxu0 0.0
  %1749 = vmatprep.subr.mxu0 0.0
  %1750 = vmatpush2.msra.mxu0 0.0
  %1751 = vmatprep.subr.mxu0 0.0
  %1752 = vmatpush2.msra.mxu0 0.0
  %1753 = vmatprep.subr.mxu0 0.0
  %1754 = vmatpush2.msra.mxu0 0.0
  %1755 = vmatprep.subr.mxu0 0.0
  %1756 = vmatpush2.msra.mxu0 0.0
  %1757 = vmatprep.subr.mxu0 0.0
  %1758 = vmatpush2.msra.mxu0 0.0
  %1759 = vmatprep.subr.mxu0 0.0
  %1760 = vmatpush2.msra.mxu0 0.0
  %1761 = vmatprep.subr.mxu0 0.0
  %1762 = vmatpush2.msra.mxu0 0.0
  %1763 = vmatprep.mubr.f32.mxu0 0.0
  %1764 = vmatmul.mubr.f32.gmra.mxu0 %v1697
  %v1765 = vpop.f32.mrf.mxu0
  %v1766 = vadd.f32 0.0, %v1765
  %v1767 = vpop.f32.mrf.mxu0
  %1768 = vdwg.mxu0
  %v1769 = vadd.f32 %v1693, %v1766
  %v1770 = vtanh.pop %v1769
  %v1771 = vxor.u32 %v1769, 2147483648
  %v1772 = vmul.f32 %v1771, 1.442695
  %v1773 = vpow.pop %v1772
  %v1774 = vadd.f32 %v1773, 1.0
  %v1775 = vrcp.pop %v1774
  %v1776 = vmul.f32 1.0, %v1775
  %v1777 = vsel %vm179, %v1770, %v1776
  %v1778 = vmul.f32 %v1777, %v1686
  %1780 = vrot.lane.b32.xlu0 %v1777, 64
  %v1781 = vpop.permute.xlu0 %1780
  %v1783 = vmul.f32 %v1777, %v1781
  %1785 = vrot.lane.b32.xlu0 %v1783, 32
  %v1786 = vpop.permute.xlu0 %1785
  %v1788 = vadd.f32 %v1778, %v1786
  %v1789 = vtanh.pop %v1788
  %1791 = vrot.lane.b32.xlu0 %v1789, 64
  %v1792 = vpop.permute.xlu0 %1791
  %v1794 = vmul.f32 %v1777, %v1792
  %v1795 = vmax.f32 %v1692, %v1794
  %v1796 = vld [vmem:[%s547] sm:$0xff]
  %1798 = vrot.lane.b32.xlu0 %v1794, 32
  %v1799 = vpop.permute.xlu0 %1798
  %v1800 = vsel %vm197, %v1799, 0
  %1802 = vmatprep.subr.mxu0 0.0
  %1803 = vmatpush1.msra.mxu0 0.0
  %1804 = vmatprep.subr.mxu0 0.0
  %1805 = vmatpush1.msra.mxu0 0.0
  %1806 = vmatprep.subr.mxu0 0.0
  %1807 = vmatpush1.msra.mxu0 0.0
  %1808 = vmatprep.subr.mxu0 0.0
  %1809 = vmatpush1.msra.mxu0 0.0
  %1810 = vmatprep.subr.mxu0 0.0
  %1811 = vmatpush1.msra.mxu0 0.0
  %1812 = vmatprep.subr.mxu0 0.0
  %1813 = vmatpush1.msra.mxu0 0.0
  %1814 = vmatprep.subr.mxu0 0.0
  %1815 = vmatpush1.msra.mxu0 0.0
  %1816 = vmatprep.subr.mxu0 0.0
  %1817 = vmatpush1.msra.mxu0 0.0
  %1818 = vmatprep.subr.mxu0 0.0
  %1819 = vmatpush1.msra.mxu0 0.0
  %1820 = vmatprep.subr.mxu0 0.0
  %1821 = vmatpush1.msra.mxu0 0.0
  %1822 = vmatprep.subr.mxu0 0.0
  %1823 = vmatpush1.msra.mxu0 0.0
  %1824 = vmatprep.subr.mxu0 0.0
  %1825 = vmatpush1.msra.mxu0 0.0
  %1826 = vmatprep.subr.mxu0 0.0
  %1827 = vmatpush1.msra.mxu0 %v1595
  %1828 = vmatprep.subr.mxu0 0.0
  %1829 = vmatpush1.msra.mxu0 %v1594
  %1830 = vmatprep.subr.mxu0 0.0
  %1831 = vmatpush1.msra.mxu0 %v1593
  %1832 = vmatprep.subr.mxu0 0.0
  %1833 = vmatpush1.msra.mxu0 %v1592
  %1834 = vmatprep.subr.mxu0 0.0
  %1835 = vmatpush2.msra.mxu0 0.0
  %1836 = vmatprep.subr.mxu0 0.0
  %1837 = vmatpush2.msra.mxu0 0.0
  %1838 = vmatprep.subr.mxu0 0.0
  %1839 = vmatpush2.msra.mxu0 0.0
  %1840 = vmatprep.subr.mxu0 0.0
  %1841 = vmatpush2.msra.mxu0 0.0
  %1842 = vmatprep.subr.mxu0 0.0
  %1843 = vmatpush2.msra.mxu0 0.0
  %1844 = vmatprep.subr.mxu0 0.0
  %1845 = vmatpush2.msra.mxu0 0.0
  %1846 = vmatprep.subr.mxu0 0.0
  %1847 = vmatpush2.msra.mxu0 0.0
  %1848 = vmatprep.subr.mxu0 0.0
  %1849 = vmatpush2.msra.mxu0 0.0
  %1850 = vmatprep.subr.mxu0 0.0
  %1851 = vmatpush2.msra.mxu0 0.0
  %1852 = vmatprep.subr.mxu0 0.0
  %1853 = vmatpush2.msra.mxu0 0.0
  %1854 = vmatprep.subr.mxu0 0.0
  %1855 = vmatpush2.msra.mxu0 0.0
  %1856 = vmatprep.subr.mxu0 0.0
  %1857 = vmatpush2.msra.mxu0 0.0
  %1858 = vmatprep.subr.mxu0 0.0
  %1859 = vmatpush2.msra.mxu0 0.0
  %1860 = vmatprep.subr.mxu0 0.0
  %1861 = vmatpush2.msra.mxu0 0.0
  %1862 = vmatprep.subr.mxu0 0.0
  %1863 = vmatpush2.msra.mxu0 0.0
  %1864 = vmatprep.subr.mxu0 0.0
  %1865 = vmatpush2.msra.mxu0 0.0
  %1866 = vmatprep.mubr.f32.mxu0 0.0
  %1867 = vmatmul.mubr.f32.gmra.mxu0 %v1800
  %v1868 = vpop.f32.mrf.mxu0
  %v1869 = vadd.f32 0.0, %v1868
  %v1870 = vpop.f32.mrf.mxu0
  %1871 = vdwg.mxu0
  %v1872 = vadd.f32 %v1796, %v1869
  %v1873 = vtanh.pop %v1872
  %v1874 = vxor.u32 %v1872, 2147483648
  %v1875 = vmul.f32 %v1874, 1.442695
  %v1876 = vpow.pop %v1875
  %v1877 = vadd.f32 %v1876, 1.0
  %v1878 = vrcp.pop %v1877
  %v1879 = vmul.f32 1.0, %v1878
  %v1880 = vsel %vm179, %v1873, %v1879
  %v1881 = vmul.f32 %v1880, %v1788
  %1883 = vrot.lane.b32.xlu0 %v1880, 64
  %v1884 = vpop.permute.xlu0 %1883
  %v1886 = vmul.f32 %v1880, %v1884
  %1888 = vrot.lane.b32.xlu0 %v1886, 32
  %v1889 = vpop.permute.xlu0 %1888
  %v1891 = vadd.f32 %v1881, %v1889
  %v1892 = vtanh.pop %v1891
  %1894 = vrot.lane.b32.xlu0 %v1892, 64
  %v1895 = vpop.permute.xlu0 %1894
  %v1897 = vmul.f32 %v1880, %v1895
  %v1898 = vmax.f32 %v1795, %v1897
  %v1899 = vld [vmem:[%s721] sm:$0xff]
  %1901 = vrot.lane.b32.xlu0 %v1897, 32
  %v1902 = vpop.permute.xlu0 %1901
  %v1903 = vsel %vm197, %v1902, 0
  %1905 = vmatprep.subr.mxu0 0.0
  %1906 = vmatpush1.msra.mxu0 0.0
  %1907 = vmatprep.subr.mxu0 0.0
  %1908 = vmatpush1.msra.mxu0 0.0
  %1909 = vmatprep.subr.mxu0 0.0
  %1910 = vmatpush1.msra.mxu0 0.0
  %1911 = vmatprep.subr.mxu0 0.0
  %1912 = vmatpush1.msra.mxu0 0.0
  %1913 = vmatprep.subr.mxu0 0.0
  %1914 = vmatpush1.msra.mxu0 0.0
  %1915 = vmatprep.subr.mxu0 0.0
  %1916 = vmatpush1.msra.mxu0 0.0
  %1917 = vmatprep.subr.mxu0 0.0
  %1918 = vmatpush1.msra.mxu0 0.0
  %1919 = vmatprep.subr.mxu0 0.0
  %1920 = vmatpush1.msra.mxu0 0.0
  %1921 = vmatprep.subr.mxu0 0.0
  %1922 = vmatpush1.msra.mxu0 0.0
  %1923 = vmatprep.subr.mxu0 0.0
  %1924 = vmatpush1.msra.mxu0 0.0
  %1925 = vmatprep.subr.mxu0 0.0
  %1926 = vmatpush1.msra.mxu0 0.0
  %1927 = vmatprep.subr.mxu0 0.0
  %1928 = vmatpush1.msra.mxu0 0.0
  %1929 = vmatprep.subr.mxu0 0.0
  %1930 = vmatpush1.msra.mxu0 %v1595
  %1931 = vmatprep.subr.mxu0 0.0
  %1932 = vmatpush1.msra.mxu0 %v1594
  %1933 = vmatprep.subr.mxu0 0.0
  %1934 = vmatpush1.msra.mxu0 %v1593
  %1935 = vmatprep.subr.mxu0 0.0
  %1936 = vmatpush1.msra.mxu0 %v1592
  %1937 = vmatprep.subr.mxu0 0.0
  %1938 = vmatpush2.msra.mxu0 0.0
  %1939 = vmatprep.subr.mxu0 0.0
  %1940 = vmatpush2.msra.mxu0 0.0
  %1941 = vmatprep.subr.mxu0 0.0
  %1942 = vmatpush2.msra.mxu0 0.0
  %1943 = vmatprep.subr.mxu0 0.0
  %1944 = vmatpush2.msra.mxu0 0.0
  %1945 = vmatprep.subr.mxu0 0.0
  %1946 = vmatpush2.msra.mxu0 0.0
  %1947 = vmatprep.subr.mxu0 0.0
  %1948 = vmatpush2.msra.mxu0 0.0
  %1949 = vmatprep.subr.mxu0 0.0
  %1950 = vmatpush2.msra.mxu0 0.0
  %1951 = vmatprep.subr.mxu0 0.0
  %1952 = vmatpush2.msra.mxu0 0.0
  %1953 = vmatprep.subr.mxu0 0.0
  %1954 = vmatpush2.msra.mxu0 0.0
  %1955 = vmatprep.subr.mxu0 0.0
  %1956 = vmatpush2.msra.mxu0 0.0
  %1957 = vmatprep.subr.mxu0 0.0
  %1958 = vmatpush2.msra.mxu0 0.0
  %1959 = vmatprep.subr.mxu0 0.0
  %1960 = vmatpush2.msra.mxu0 0.0
  %1961 = vmatprep.subr.mxu0 0.0
  %1962 = vmatpush2.msra.mxu0 0.0
  %1963 = vmatprep.subr.mxu0 0.0
  %1964 = vmatpush2.msra.mxu0 0.0
  %1965 = vmatprep.subr.mxu0 0.0
  %1966 = vmatpush2.msra.mxu0 0.0
  %1967 = vmatprep.subr.mxu0 0.0
  %1968 = vmatpush2.msra.mxu0 0.0
  %1969 = vmatprep.mubr.f32.mxu0 0.0
  %1970 = vmatmul.mubr.f32.gmra.mxu0 %v1903
  %v1971 = vpop.f32.mrf.mxu0
  %v1972 = vadd.f32 0.0, %v1971
  %v1973 = vpop.f32.mrf.mxu0
  %1974 = vdwg.mxu0
  %v1975 = vadd.f32 %v1899, %v1972
  %v1976 = vtanh.pop %v1975
  %v1977 = vxor.u32 %v1975, 2147483648
  %v1978 = vmul.f32 %v1977, 1.442695
  %v1979 = vpow.pop %v1978
  %v1980 = vadd.f32 %v1979, 1.0
  %v1981 = vrcp.pop %v1980
  %v1982 = vmul.f32 1.0, %v1981
  %v1983 = vsel %vm179, %v1976, %v1982
  %v1984 = vmul.f32 %v1983, %v1891
  %1986 = vrot.lane.b32.xlu0 %v1983, 64
  %v1987 = vpop.permute.xlu0 %1986
  %v1989 = vmul.f32 %v1983, %v1987
  %1991 = vrot.lane.b32.xlu0 %v1989, 32
  %v1992 = vpop.permute.xlu0 %1991
  %v1994 = vadd.f32 %v1984, %v1992
  %v1995 = vtanh.pop %v1994
  %1997 = vrot.lane.b32.xlu0 %v1995, 64
  %v1998 = vpop.permute.xlu0 %1997
  %v2000 = vmul.f32 %v1983, %v1998
  %v2001 = vmax.f32 %v1898, %v2000
  %v2002 = vld [vmem:[%s895] sm:$0xff]
  %2004 = vrot.lane.b32.xlu0 %v2000, 32
  %v2005 = vpop.permute.xlu0 %2004
  %v2006 = vsel %vm197, %v2005, 0
  %2008 = vmatprep.subr.mxu0 0.0
  %2009 = vmatpush1.msra.mxu0 0.0
  %2010 = vmatprep.subr.mxu0 0.0
  %2011 = vmatpush1.msra.mxu0 0.0
  %2012 = vmatprep.subr.mxu0 0.0
  %2013 = vmatpush1.msra.mxu0 0.0
  %2014 = vmatprep.subr.mxu0 0.0
  %2015 = vmatpush1.msra.mxu0 0.0
  %2016 = vmatprep.subr.mxu0 0.0
  %2017 = vmatpush1.msra.mxu0 0.0
  %2018 = vmatprep.subr.mxu0 0.0
  %2019 = vmatpush1.msra.mxu0 0.0
  %2020 = vmatprep.subr.mxu0 0.0
  %2021 = vmatpush1.msra.mxu0 0.0
  %2022 = vmatprep.subr.mxu0 0.0
  %2023 = vmatpush1.msra.mxu0 0.0
  %2024 = vmatprep.subr.mxu0 0.0
  %2025 = vmatpush1.msra.mxu0 0.0
  %2026 = vmatprep.subr.mxu0 0.0
  %2027 = vmatpush1.msra.mxu0 0.0
  %2028 = vmatprep.subr.mxu0 0.0
  %2029 = vmatpush1.msra.mxu0 0.0
  %2030 = vmatprep.subr.mxu0 0.0
  %2031 = vmatpush1.msra.mxu0 0.0
  %2032 = vmatprep.subr.mxu0 0.0
  %2033 = vmatpush1.msra.mxu0 %v1595
  %2034 = vmatprep.subr.mxu0 0.0
  %2035 = vmatpush1.msra.mxu0 %v1594
  %2036 = vmatprep.subr.mxu0 0.0
  %2037 = vmatpush1.msra.mxu0 %v1593
  %2038 = vmatprep.subr.mxu0 0.0
  %2039 = vmatpush1.msra.mxu0 %v1592
  %2040 = vmatprep.subr.mxu0 0.0
  %2041 = vmatpush2.msra.mxu0 0.0
  %2042 = vmatprep.subr.mxu0 0.0
  %2043 = vmatpush2.msra.mxu0 0.0
  %2044 = vmatprep.subr.mxu0 0.0
  %2045 = vmatpush2.msra.mxu0 0.0
  %2046 = vmatprep.subr.mxu0 0.0
  %2047 = vmatpush2.msra.mxu0 0.0
  %2048 = vmatprep.subr.mxu0 0.0
  %2049 = vmatpush2.msra.mxu0 0.0
  %2050 = vmatprep.subr.mxu0 0.0
  %2051 = vmatpush2.msra.mxu0 0.0
  %2052 = vmatprep.subr.mxu0 0.0
  %2053 = vmatpush2.msra.mxu0 0.0
  %2054 = vmatprep.subr.mxu0 0.0
  %2055 = vmatpush2.msra.mxu0 0.0
  %2056 = vmatprep.subr.mxu0 0.0
  %2057 = vmatpush2.msra.mxu0 0.0
  %2058 = vmatprep.subr.mxu0 0.0
  %2059 = vmatpush2.msra.mxu0 0.0
  %2060 = vmatprep.subr.mxu0 0.0
  %2061 = vmatpush2.msra.mxu0 0.0
  %2062 = vmatprep.subr.mxu0 0.0
  %2063 = vmatpush2.msra.mxu0 0.0
  %2064 = vmatprep.subr.mxu0 0.0
  %2065 = vmatpush2.msra.mxu0 0.0
  %2066 = vmatprep.subr.mxu0 0.0
  %2067 = vmatpush2.msra.mxu0 0.0
  %2068 = vmatprep.subr.mxu0 0.0
  %2069 = vmatpush2.msra.mxu0 0.0
  %2070 = vmatprep.subr.mxu0 0.0
  %2071 = vmatpush2.msra.mxu0 0.0
  %2072 = vmatprep.mubr.f32.mxu0 0.0
  %2073 = vmatmul.mubr.f32.gmra.mxu0 %v2006
  %v2074 = vpop.f32.mrf.mxu0
  %v2075 = vadd.f32 0.0, %v2074
  %v2076 = vpop.f32.mrf.mxu0
  %2077 = vdwg.mxu0
  %v2078 = vadd.f32 %v2002, %v2075
  %v2079 = vtanh.pop %v2078
  %v2080 = vxor.u32 %v2078, 2147483648
  %v2081 = vmul.f32 %v2080, 1.442695
  %v2082 = vpow.pop %v2081
  %v2083 = vadd.f32 %v2082, 1.0
  %v2084 = vrcp.pop %v2083
  %v2085 = vmul.f32 1.0, %v2084
  %v2086 = vsel %vm179, %v2079, %v2085
  %v2087 = vmul.f32 %v2086, %v1994
  %2089 = vrot.lane.b32.xlu0 %v2086, 64
  %v2090 = vpop.permute.xlu0 %2089
  %v2092 = vmul.f32 %v2086, %v2090
  %2094 = vrot.lane.b32.xlu0 %v2092, 32
  %v2095 = vpop.permute.xlu0 %2094
  %v2097 = vadd.f32 %v2087, %v2095
  %v2098 = vtanh.pop %v2097
  %2100 = vrot.lane.b32.xlu0 %v2098, 64
  %v2101 = vpop.permute.xlu0 %2100
  %v2103 = vmul.f32 %v2086, %v2101
  %v2104 = vmax.f32 %v2001, %v2103
  %v2105 = vld [vmem:[%s1069] sm:$0xff]
  %2107 = vrot.lane.b32.xlu0 %v2103, 32
  %v2108 = vpop.permute.xlu0 %2107
  %v2109 = vsel %vm197, %v2108, 0
  %2111 = vmatprep.subr.mxu0 0.0
  %2112 = vmatpush1.msra.mxu0 0.0
  %2113 = vmatprep.subr.mxu0 0.0
  %2114 = vmatpush1.msra.mxu0 0.0
  %2115 = vmatprep.subr.mxu0 0.0
  %2116 = vmatpush1.msra.mxu0 0.0
  %2117 = vmatprep.subr.mxu0 0.0
  %2118 = vmatpush1.msra.mxu0 0.0
  %2119 = vmatprep.subr.mxu0 0.0
  %2120 = vmatpush1.msra.mxu0 0.0
  %2121 = vmatprep.subr.mxu0 0.0
  %2122 = vmatpush1.msra.mxu0 0.0
  %2123 = vmatprep.subr.mxu0 0.0
  %2124 = vmatpush1.msra.mxu0 0.0
  %2125 = vmatprep.subr.mxu0 0.0
  %2126 = vmatpush1.msra.mxu0 0.0
  %2127 = vmatprep.subr.mxu0 0.0
  %2128 = vmatpush1.msra.mxu0 0.0
  %2129 = vmatprep.subr.mxu0 0.0
  %2130 = vmatpush1.msra.mxu0 0.0
  %2131 = vmatprep.subr.mxu0 0.0
  %2132 = vmatpush1.msra.mxu0 0.0
  %2133 = vmatprep.subr.mxu0 0.0
  %2134 = vmatpush1.msra.mxu0 0.0
  %2135 = vmatprep.subr.mxu0 0.0
  %2136 = vmatpush1.msra.mxu0 %v1595
  %2137 = vmatprep.subr.mxu0 0.0
  %2138 = vmatpush1.msra.mxu0 %v1594
  %2139 = vmatprep.subr.mxu0 0.0
  %2140 = vmatpush1.msra.mxu0 %v1593
  %2141 = vmatprep.subr.mxu0 0.0
  %2142 = vmatpush1.msra.mxu0 %v1592
  %2143 = vmatprep.subr.mxu0 0.0
  %2144 = vmatpush2.msra.mxu0 0.0
  %2145 = vmatprep.subr.mxu0 0.0
  %2146 = vmatpush2.msra.mxu0 0.0
  %2147 = vmatprep.subr.mxu0 0.0
  %2148 = vmatpush2.msra.mxu0 0.0
  %2149 = vmatprep.subr.mxu0 0.0
  %2150 = vmatpush2.msra.mxu0 0.0
  %2151 = vmatprep.subr.mxu0 0.0
  %2152 = vmatpush2.msra.mxu0 0.0
  %2153 = vmatprep.subr.mxu0 0.0
  %2154 = vmatpush2.msra.mxu0 0.0
  %2155 = vmatprep.subr.mxu0 0.0
  %2156 = vmatpush2.msra.mxu0 0.0
  %2157 = vmatprep.subr.mxu0 0.0
  %2158 = vmatpush2.msra.mxu0 0.0
  %2159 = vmatprep.subr.mxu0 0.0
  %2160 = vmatpush2.msra.mxu0 0.0
  %2161 = vmatprep.subr.mxu0 0.0
  %2162 = vmatpush2.msra.mxu0 0.0
  %2163 = vmatprep.subr.mxu0 0.0
  %2164 = vmatpush2.msra.mxu0 0.0
  %2165 = vmatprep.subr.mxu0 0.0
  %2166 = vmatpush2.msra.mxu0 0.0
  %2167 = vmatprep.subr.mxu0 0.0
  %2168 = vmatpush2.msra.mxu0 0.0
  %2169 = vmatprep.subr.mxu0 0.0
  %2170 = vmatpush2.msra.mxu0 0.0
  %2171 = vmatprep.subr.mxu0 0.0
  %2172 = vmatpush2.msra.mxu0 0.0
  %2173 = vmatprep.subr.mxu0 0.0
  %2174 = vmatpush2.msra.mxu0 0.0
  %2175 = vmatprep.mubr.f32.mxu0 0.0
  %2176 = vmatmul.mubr.f32.gmra.mxu0 %v2109
  %v2177 = vpop.f32.mrf.mxu0
  %v2178 = vadd.f32 0.0, %v2177
  %v2179 = vpop.f32.mrf.mxu0
  %2180 = vdwg.mxu0
  %v2181 = vadd.f32 %v2105, %v2178
  %v2182 = vtanh.pop %v2181
  %v2183 = vxor.u32 %v2181, 2147483648
  %v2184 = vmul.f32 %v2183, 1.442695
  %v2185 = vpow.pop %v2184
  %v2186 = vadd.f32 %v2185, 1.0
  %v2187 = vrcp.pop %v2186
  %v2188 = vmul.f32 1.0, %v2187
  %v2189 = vsel %vm179, %v2182, %v2188
  %v2190 = vmul.f32 %v2189, %v2097
  %2192 = vrot.lane.b32.xlu0 %v2189, 64
  %v2193 = vpop.permute.xlu0 %2192
  %v2195 = vmul.f32 %v2189, %v2193
  %2197 = vrot.lane.b32.xlu0 %v2195, 32
  %v2198 = vpop.permute.xlu0 %2197
  %v2200 = vadd.f32 %v2190, %v2198
  %v2201 = vtanh.pop %v2200
  %2203 = vrot.lane.b32.xlu0 %v2201, 64
  %v2204 = vpop.permute.xlu0 %2203
  %v2206 = vmul.f32 %v2189, %v2204
  %v2207 = vmax.f32 %v2104, %v2206
  %v2208 = vld [vmem:[%s1243] sm:$0xff]
  %2210 = vrot.lane.b32.xlu0 %v2206, 32
  %v2211 = vpop.permute.xlu0 %2210
  %v2212 = vsel %vm197, %v2211, 0
  %2214 = vmatprep.subr.mxu0 0.0
  %2215 = vmatpush1.msra.mxu0 0.0
  %2216 = vmatprep.subr.mxu0 0.0
  %2217 = vmatpush1.msra.mxu0 0.0
  %2218 = vmatprep.subr.mxu0 0.0
  %2219 = vmatpush1.msra.mxu0 0.0
  %2220 = vmatprep.subr.mxu0 0.0
  %2221 = vmatpush1.msra.mxu0 0.0
  %2222 = vmatprep.subr.mxu0 0.0
  %2223 = vmatpush1.msra.mxu0 0.0
  %2224 = vmatprep.subr.mxu0 0.0
  %2225 = vmatpush1.msra.mxu0 0.0
  %2226 = vmatprep.subr.mxu0 0.0
  %2227 = vmatpush1.msra.mxu0 0.0
  %2228 = vmatprep.subr.mxu0 0.0
  %2229 = vmatpush1.msra.mxu0 0.0
  %2230 = vmatprep.subr.mxu0 0.0
  %2231 = vmatpush1.msra.mxu0 0.0
  %2232 = vmatprep.subr.mxu0 0.0
  %2233 = vmatpush1.msra.mxu0 0.0
  %2234 = vmatprep.subr.mxu0 0.0
  %2235 = vmatpush1.msra.mxu0 0.0
  %2236 = vmatprep.subr.mxu0 0.0
  %2237 = vmatpush1.msra.mxu0 0.0
  %2238 = vmatprep.subr.mxu0 0.0
  %2239 = vmatpush1.msra.mxu0 %v1595
  %2240 = vmatprep.subr.mxu0 0.0
  %2241 = vmatpush1.msra.mxu0 %v1594
  %2242 = vmatprep.subr.mxu0 0.0
  %2243 = vmatpush1.msra.mxu0 %v1593
  %2244 = vmatprep.subr.mxu0 0.0
  %2245 = vmatpush1.msra.mxu0 %v1592
  %2246 = vmatprep.subr.mxu0 0.0
  %2247 = vmatpush2.msra.mxu0 0.0
  %2248 = vmatprep.subr.mxu0 0.0
  %2249 = vmatpush2.msra.mxu0 0.0
  %2250 = vmatprep.subr.mxu0 0.0
  %2251 = vmatpush2.msra.mxu0 0.0
  %2252 = vmatprep.subr.mxu0 0.0
  %2253 = vmatpush2.msra.mxu0 0.0
  %2254 = vmatprep.subr.mxu0 0.0
  %2255 = vmatpush2.msra.mxu0 0.0
  %2256 = vmatprep.subr.mxu0 0.0
  %2257 = vmatpush2.msra.mxu0 0.0
  %2258 = vmatprep.subr.mxu0 0.0
  %2259 = vmatpush2.msra.mxu0 0.0
  %2260 = vmatprep.subr.mxu0 0.0
  %2261 = vmatpush2.msra.mxu0 0.0
  %2262 = vmatprep.subr.mxu0 0.0
  %2263 = vmatpush2.msra.mxu0 0.0
  %2264 = vmatprep.subr.mxu0 0.0
  %2265 = vmatpush2.msra.mxu0 0.0
  %2266 = vmatprep.subr.mxu0 0.0
  %2267 = vmatpush2.msra.mxu0 0.0
  %2268 = vmatprep.subr.mxu0 0.0
  %2269 = vmatpush2.msra.mxu0 0.0
  %2270 = vmatprep.subr.mxu0 0.0
  %2271 = vmatpush2.msra.mxu0 0.0
  %2272 = vmatprep.subr.mxu0 0.0
  %2273 = vmatpush2.msra.mxu0 0.0
  %2274 = vmatprep.subr.mxu0 0.0
  %2275 = vmatpush2.msra.mxu0 0.0
  %2276 = vmatprep.subr.mxu0 0.0
  %2277 = vmatpush2.msra.mxu0 0.0
  %2278 = vmatprep.mubr.f32.mxu0 0.0
  %2279 = vmatmul.mubr.f32.gmra.mxu0 %v2212
  %v2280 = vpop.f32.mrf.mxu0
  %v2281 = vadd.f32 0.0, %v2280
  %v2282 = vpop.f32.mrf.mxu0
  %2283 = vdwg.mxu0
  %v2284 = vadd.f32 %v2208, %v2281
  %v2285 = vtanh.pop %v2284
  %v2286 = vxor.u32 %v2284, 2147483648
  %v2287 = vmul.f32 %v2286, 1.442695
  %v2288 = vpow.pop %v2287
  %v2289 = vadd.f32 %v2288, 1.0
  %v2290 = vrcp.pop %v2289
  %v2291 = vmul.f32 1.0, %v2290
  %v2292 = vsel %vm179, %v2285, %v2291
  %v2293 = vmul.f32 %v2292, %v2200
  %2295 = vrot.lane.b32.xlu0 %v2292, 64
  %v2296 = vpop.permute.xlu0 %2295
  %v2298 = vmul.f32 %v2292, %v2296
  %2300 = vrot.lane.b32.xlu0 %v2298, 32
  %v2301 = vpop.permute.xlu0 %2300
  %v2303 = vadd.f32 %v2293, %v2301
  %v2304 = vtanh.pop %v2303
  %2306 = vrot.lane.b32.xlu0 %v2304, 64
  %v2307 = vpop.permute.xlu0 %2306
  %v2309 = vmul.f32 %v2292, %v2307
  %v2310 = vmax.f32 %v2207, %v2309
  %v2311 = vld [vmem:[%s1417] sm:$0xff]
  %2313 = vrot.lane.b32.xlu0 %v2309, 32
  %v2314 = vpop.permute.xlu0 %2313
  %v2315 = vsel %vm197, %v2314, 0
  %2317 = vmatprep.subr.mxu0 0.0
  %2318 = vmatpush1.msra.mxu0 0.0
  %2319 = vmatprep.subr.mxu0 0.0
  %2320 = vmatpush1.msra.mxu0 0.0
  %2321 = vmatprep.subr.mxu0 0.0
  %2322 = vmatpush1.msra.mxu0 0.0
  %2323 = vmatprep.subr.mxu0 0.0
  %2324 = vmatpush1.msra.mxu0 0.0
  %2325 = vmatprep.subr.mxu0 0.0
  %2326 = vmatpush1.msra.mxu0 0.0
  %2327 = vmatprep.subr.mxu0 0.0
  %2328 = vmatpush1.msra.mxu0 0.0
  %2329 = vmatprep.subr.mxu0 0.0
  %2330 = vmatpush1.msra.mxu0 0.0
  %2331 = vmatprep.subr.mxu0 0.0
  %2332 = vmatpush1.msra.mxu0 0.0
  %2333 = vmatprep.subr.mxu0 0.0
  %2334 = vmatpush1.msra.mxu0 0.0
  %2335 = vmatprep.subr.mxu0 0.0
  %2336 = vmatpush1.msra.mxu0 0.0
  %2337 = vmatprep.subr.mxu0 0.0
  %2338 = vmatpush1.msra.mxu0 0.0
  %2339 = vmatprep.subr.mxu0 0.0
  %2340 = vmatpush1.msra.mxu0 0.0
  %2341 = vmatprep.subr.mxu0 0.0
  %2342 = vmatpush1.msra.mxu0 %v1595
  %2343 = vmatprep.subr.mxu0 0.0
  %2344 = vmatpush1.msra.mxu0 %v1594
  %2345 = vmatprep.subr.mxu0 0.0
  %2346 = vmatpush1.msra.mxu0 %v1593
  %2347 = vmatprep.subr.mxu0 0.0
  %2348 = vmatpush1.msra.mxu0 %v1592
  %2349 = vmatprep.subr.mxu0 0.0
  %2350 = vmatpush2.msra.mxu0 0.0
  %2351 = vmatprep.subr.mxu0 0.0
  %2352 = vmatpush2.msra.mxu0 0.0
  %2353 = vmatprep.subr.mxu0 0.0
  %2354 = vmatpush2.msra.mxu0 0.0
  %2355 = vmatprep.subr.mxu0 0.0
  %2356 = vmatpush2.msra.mxu0 0.0
  %2357 = vmatprep.subr.mxu0 0.0
  %2358 = vmatpush2.msra.mxu0 0.0
  %2359 = vmatprep.subr.mxu0 0.0
  %2360 = vmatpush2.msra.mxu0 0.0
  %2361 = vmatprep.subr.mxu0 0.0
  %2362 = vmatpush2.msra.mxu0 0.0
  %2363 = vmatprep.subr.mxu0 0.0
  %2364 = vmatpush2.msra.mxu0 0.0
  %2365 = vmatprep.subr.mxu0 0.0
  %2366 = vmatpush2.msra.mxu0 0.0
  %2367 = vmatprep.subr.mxu0 0.0
  %2368 = vmatpush2.msra.mxu0 0.0
  %2369 = vmatprep.subr.mxu0 0.0
  %2370 = vmatpush2.msra.mxu0 0.0
  %2371 = vmatprep.subr.mxu0 0.0
  %2372 = vmatpush2.msra.mxu0 0.0
  %2373 = vmatprep.subr.mxu0 0.0
  %2374 = vmatpush2.msra.mxu0 0.0
  %2375 = vmatprep.subr.mxu0 0.0
  %2376 = vmatpush2.msra.mxu0 0.0
  %2377 = vmatprep.subr.mxu0 0.0
  %2378 = vmatpush2.msra.mxu0 0.0
  %2379 = vmatprep.subr.mxu0 0.0
  %2380 = vmatpush2.msra.mxu0 0.0
  %2381 = vmatprep.mubr.f32.mxu0 0.0
  %2382 = vmatmul.mubr.f32.gmra.mxu0 %v2315
  %v2383 = vpop.f32.mrf.mxu0
  %v2384 = vadd.f32 0.0, %v2383
  %v2385 = vpop.f32.mrf.mxu0
  %2386 = vdwg.mxu0
  %v2387 = vadd.f32 %v2311, %v2384
  %v2388 = vtanh.pop %v2387
  %v2389 = vxor.u32 %v2387, 2147483648
  %v2390 = vmul.f32 %v2389, 1.442695
  %v2391 = vpow.pop %v2390
  %v2392 = vadd.f32 %v2391, 1.0
  %v2393 = vrcp.pop %v2392
  %v2394 = vmul.f32 1.0, %v2393
  %v2395 = vsel %vm179, %v2388, %v2394
  %v2396 = vmul.f32 %v2395, %v2303
  %2398 = vrot.lane.b32.xlu0 %v2395, 64
  %v2399 = vpop.permute.xlu0 %2398
  %v2401 = vmul.f32 %v2395, %v2399
  %2403 = vrot.lane.b32.xlu0 %v2401, 32
  %v2404 = vpop.permute.xlu0 %2403
  %v2406 = vadd.f32 %v2396, %v2404
  %v2407 = vtanh.pop %v2406
  %2409 = vrot.lane.b32.xlu0 %v2407, 64
  %v2410 = vpop.permute.xlu0 %2409
  %v2412 = vmul.f32 %v2395, %v2410
  %v2413 = vmax.f32 %v2310, %v2412
  %2415 = vrot.lane.b32.xlu0 %v2413, 32
  %v2416 = vpop.permute.xlu0 %2415
  %2418 = vst.msk [vmem:[%s5] sm:$0xff] %vm197, %v2416
  // Predicated region
  $region22: #{text_lstm_forward.1} parent=0 // pred_check
    _
  $region23: #{text_lstm_forward.1} parent=0 // pred_check_branch
    %2420 = sbr.rel (0) target = $region25
  $region24: #{text_lstm_forward.1} parent=0 // pred_region
    _
  $region25: #{text_lstm_forward.1} parent=0 // pred_fallthru
    _
  // Predicated region
  $region26: #{text_lstm_forward.1} parent=0 // pred_check
    _
  $region27: #{text_lstm_forward.1} parent=0 // pred_check_branch
    %2422 = sbr.rel (0) target = $region29
  $region28: #{text_lstm_forward.1} parent=0 // pred_region
    _
  $region29: #{text_lstm_forward.1} parent=0 // pred_fallthru
    _

</llo_original>
